<compile_context>
chip_gen: v7x
topology: tpu7x:2x2x1
jax: 0.10.0
libtpu: 0.0.40
codegen_flags: <defaults>
</compile_context>

<pallas_src>
import functools

import jax
import jax.numpy as jnp
from jax.experimental import pallas as pl
from jax.experimental.pallas import tpu as pltpu


def _local_attention_kernel(x_ref, wt_ref, dwb_ref, wblk_ref, pwb_ref,
                            o_ref, xpad_ref, xs_ref, *, K, C, pad):
    """One block of Nb images per grid step, lane-dense (Nb, H, W*C) layout.

    x_ref   : (Nb, H, W*C)            input slab
    wt_ref  : (K*K, W*C)              depthwise weights, BN scale folded, W-tiled
    dwb_ref : (1, W*C)                folded depthwise/BN bias, W-tiled
    wblk_ref: (W*C, W*C)              block-diagonal 1x1-conv weight
    pwb_ref : (1, W*C)                1x1-conv bias, W-tiled
    o_ref   : (Nb, H, W*C)            output slab
    xpad_ref: (Nb, H+K-1, (W+K-1)*C)  halo scratch (borders zero, centre = x)
    xs_ref  : (2, Nb, H+K-1, W*C)     per-kj lane-shifted slab (double buffered)
    """
    Nb, H, Lw = x_ref.shape
    CP = pad * C                       # lane halo width
    Wp = Lw + 2 * CP                   # padded lane extent
    f32 = jnp.float32

    # --- Halo maintenance ---------------------------------------------------
    # Zero only the four thin border strips (not the whole slab); the centre is
    # fully overwritten below.  Unconditional so it stays correct even when the
    # "parallel" batch axis is split across TensorCores (v7x megacore).
    zrow = jnp.zeros((Nb, pad, Wp), f32)
    xpad_ref[:, :pad, :] = zrow
    xpad_ref[:, pad + H:, :] = zrow
    zcol = jnp.zeros((Nb, H, CP), f32)
    xpad_ref[:, pad:pad + H, :CP] = zcol
    xpad_ref[:, pad:pad + H, CP + Lw:] = zcol
    # Centre <- current input block.
    xpad_ref[:, pad:pad + H, CP:CP + Lw] = x_ref[...].astype(f32)

    # --- Depthwise KxK conv (BN scale/bias folded into wt/dwb) --------------
    wt = wt_ref[...]                                      # load weights once
    acc = jnp.broadcast_to(dwb_ref[...], (Nb, H, Lw)).astype(f32)
    for kj in range(K):                                   # lane (W) direction
        slot = kj % 2                                     # break WAR chains
        lo = kj * C
        # One lane shift per kj, materialised in VMEM; the ki taps below are
        # cheap sublane-offset loads from this slab.
        xs_ref[slot] = xpad_ref[:, :, lo:lo + Lw]         # (Nb, H+2p, Lw)
        for ki in range(K):                               # row (H) direction
            t = ki * K + kj
            w_row = wt[t:t + 1, :]                        # (1, Lw)
            acc = acc + xs_ref[slot, :, ki:ki + H, :] * w_row
    acc = jnp.maximum(acc, 0.0)                           # ReLU

    # --- 1x1 conv on the MXU + sigmoid gate ----------------------------------
    y = jnp.dot(acc.reshape(Nb * H, Lw), wblk_ref[...],
                preferred_element_type=jnp.float32)
    y = y + pwb_ref[...]
    att = jax.nn.sigmoid(y).reshape(Nb, H, Lw)

    # Re-read x (lane-aligned) instead of keeping it live across the matmul.
    o_ref[...] = (x_ref[...].astype(f32) * att).astype(o_ref.dtype)


def _fold_bn(params, eps=1e-5):
    scale = params["bn_gamma"] / jnp.sqrt(params["bn_var"] + eps)
    shift = params["bn_beta"] - params["bn_mean"] * scale
    return scale, shift


def _pick_batch_block(N, images_per_step):
    """Largest divisor of N that is <= images_per_step, capped so the grid has
    at least two steps whenever N >= 2 (v7x: lets the 'parallel' axis shard
    across both TensorCores; harmless on single-core v5e/v6e)."""
    cap = min(N, images_per_step)
    if N > 1:
        cap = min(cap, N // 2)
    return max(d for d in range(1, cap + 1) if N % d == 0)


def local_attention_block_nhwc(x_nhwc, params, window_size=7,
                               images_per_step=16):
    """NHWC in / NHWC out.  NHWC callers should use this entry point directly
    and skip the NCHW<->NHWC transposes."""
    K = window_size
    pad = K // 2
    N, H, W, C = x_nhwc.shape
    Lw = W * C
    Nb = _pick_batch_block(N, images_per_step)

    # Fold BN (inference) + depthwise bias into the depthwise weights.
    scale, shift = _fold_bn(params)
    dw = params["dw_w"] * scale                               # (K, K, C)
    dwb = params["dw_b"] * scale + shift                      # (C,)

    # Tile per-channel quantities across the W*C lane axis.
    wt_tiled = jnp.tile(dw.reshape(K * K, C), (1, W))         # (K*K, W*C)
    dwb_tiled = jnp.tile(dwb, W).reshape(1, Lw)               # (1, W*C)
    pwb_tiled = jnp.tile(params["pw_b"], W).reshape(1, Lw)    # (1, W*C)

    # Block-diagonal 1x1-conv weight: W copies of pw_w (cin, cout) on the
    # diagonal so the channel contraction stays in the lane-dense layout.
    pw = params["pw_w"].astype(jnp.float32)                   # (cin, cout)
    wblk = (jnp.eye(W, dtype=jnp.float32)[:, None, :, None]
            * pw[None, :, None, :]).reshape(Lw, Lw)

    x_ld = x_nhwc.reshape(N, H, Lw)                           # lane-dense view

    # Per-step VMEM footprint (double-buffered I/O + scratch + constants);
    # raise the scoped limit accordingly, capped below v7x's 64 MiB physical.
    itemsize = jnp.dtype(x_nhwc.dtype).itemsize
    Hp, Wp = H + 2 * pad, (W + 2 * pad) * C
    vmem_needed = (4 * Nb * H * Lw * itemsize                 # in + out, 2x buffered
                   + Nb * Hp * Wp * 4                         # halo scratch
                   + 2 * Nb * Hp * Lw * 4                     # lane-shift scratch
                   + 2 * (K * K * Lw + 2 * Lw + Lw * Lw) * 4)
    vmem_limit = int(min(max(2 * vmem_needed, 32 * 1024 * 1024),
                         56 * 1024 * 1024))

    kernel = functools.partial(_local_attention_kernel, K=K, C=C, pad=pad)
    out = pl.pallas_call(
        kernel,
        out_shape=jax.ShapeDtypeStruct((N, H, Lw), x_nhwc.dtype),
        grid=(N // Nb,),
        in_specs=[
            pl.BlockSpec((Nb, H, Lw), lambda n: (n, 0, 0)),
            pl.BlockSpec((K * K, Lw), lambda n: (0, 0)),
            pl.BlockSpec((1, Lw), lambda n: (0, 0)),
            pl.BlockSpec((Lw, Lw), lambda n: (0, 0)),
            pl.BlockSpec((1, Lw), lambda n: (0, 0)),
        ],
        out_specs=pl.BlockSpec((Nb, H, Lw), lambda n: (n, 0, 0)),
        scratch_shapes=[
            pltpu.VMEM((Nb, Hp, Wp), jnp.float32),            # halo scratch
            pltpu.VMEM((2, Nb, Hp, Lw), jnp.float32),         # per-kj slabs
        ],
        compiler_params=pltpu.CompilerParams(
            dimension_semantics=("parallel",),
            vmem_limit_bytes=vmem_limit),
    )(x_ld,
      wt_tiled.astype(jnp.float32),
      dwb_tiled.astype(jnp.float32),
      wblk,
      pwb_tiled.astype(jnp.float32))
    return out.reshape(N, H, W, C)


def local_attention_block(x_nchw, params, window_size=7):
    """NCHW in / NCHW out (PyTorch module convention).

    NOTE: params["pw_w"] is laid out (c_in, c_out); a PyTorch Conv2d 1x1
    weight of shape (c_out, c_in, 1, 1) must be transposed when building
    params.  The two transposes below are edge cost only.
    """
    x = jnp.transpose(x_nchw, (0, 2, 3, 1))                   # -> NHWC
    out = local_attention_block_nhwc(x, params, window_size)
    return jnp.transpose(out, (0, 3, 1, 2))                   # -> NCHW


def _reference(x_nchw, params, window_size=7):
    """Pure-JAX reference (lax conv / einsum at HIGHEST precision)."""
    K = window_size
    x = jnp.transpose(x_nchw, (0, 2, 3, 1))                   # NHWC
    N, H, W, C = x.shape
    rhs = params["dw_w"].reshape(K, K, 1, C)                  # HWIO, groups=C
    y = jax.lax.conv_general_dilated(
        x, rhs, window_strides=(1, 1), padding="SAME",
        feature_group_count=C,
        dimension_numbers=("NHWC", "HWIO", "NHWC"),
        precision=jax.lax.Precision.HIGHEST)
    y = y + params["dw_b"]
    scale, shift = _fold_bn(params)
    y = jnp.maximum(y * scale + shift, 0.0)
    y = jnp.einsum("nhwc,co->nhwo", y, params["pw_w"],
                   precision=jax.lax.Precision.HIGHEST) + params["pw_b"]
    att = jax.nn.sigmoid(y)
    out = x * att
    return jnp.transpose(out, (0, 3, 1, 2))                   # NCHW


if __name__ == "__main__":
    key = jax.random.PRNGKey(0)
    N, C, H, W = 2, 8, 16, 16          # W*C = 128 -> exactly one lane tile
    K = 7
    keys = jax.random.split(key, 9)

    x = jax.random.normal(keys[0], (N, C, H, W), jnp.float32)
    params = {
        "dw_w": 0.1 * jax.random.normal(keys[1], (K, K, C), jnp.float32),
        "dw_b": 0.1 * jax.random.normal(keys[2], (C,), jnp.float32),
        "bn_gamma": jax.random.uniform(keys[3], (C,), jnp.float32, 0.5, 1.5),
        "bn_beta": 0.1 * jax.random.normal(keys[4], (C,), jnp.float32),
        "bn_mean": 0.1 * jax.random.normal(keys[5], (C,), jnp.float32),
        "bn_var": jax.random.uniform(keys[6], (C,), jnp.float32, 0.5, 1.5),
        "pw_w": 0.1 * jax.random.normal(keys[7], (C, C), jnp.float32),
        "pw_b": 0.1 * jax.random.normal(keys[8], (C,), jnp.float32),
    }

    out = jax.block_until_ready(local_attention_block(x, params, window_size=K))

    ref = _reference(x, params, window_size=K)
    assert out.shape == x.shape and out.dtype == x.dtype
    max_err = float(jnp.max(jnp.abs(out - ref)))
    # Tolerance allows for MXU default-precision handling of the f32 1x1-conv
    # matmul; real indexing/fold bugs produce O(0.1) errors.
    assert max_err < 2e-3, f"max_err={max_err}"

    print("KERNEL_OK")
</pallas_src>

<mosaic_0001>
module attributes {stable_mosaic.version = 11 : i64} {
  func.func @_local_attention_kernel(%arg0: i32, %arg1: memref<1x16x128xf32, #tpu.memory_space<vmem>>, %arg2: memref<49x128xf32, #tpu.memory_space<vmem>>, %arg3: memref<1x128xf32, #tpu.memory_space<vmem>>, %arg4: memref<128x128xf32, #tpu.memory_space<vmem>>, %arg5: memref<1x128xf32, #tpu.memory_space<vmem>>, %arg6: memref<1x16x128xf32, #tpu.memory_space<vmem>>, %arg7: memref<1x22x176xf32, #tpu.memory_space<vmem>>, %arg8: memref<2x1x22x128xf32, #tpu.memory_space<vmem>>) attributes {dimension_semantics = [#tpu.dimension_semantics<parallel>], iteration_bounds = array<i64: 2>, scalar_prefetch = 0 : i64, scratch_operands = 2 : i64, tpu.core_type = #tpu.core_type<tc>, window_params = [{transform_indices = @transform_0, window_bounds = array<i64: 1, 16, 128>}, {pipeline_mode = #tpu.pipeline_mode<synchronous>, transform_indices = @transform_1, window_bounds = array<i64: 49, 128>}, {pipeline_mode = #tpu.pipeline_mode<synchronous>, transform_indices = @transform_2, window_bounds = array<i64: 1, 128>}, {pipeline_mode = #tpu.pipeline_mode<synchronous>, transform_indices = @transform_3, window_bounds = array<i64: 128, 128>}, {pipeline_mode = #tpu.pipeline_mode<synchronous>, transform_indices = @transform_4, window_bounds = array<i64: 1, 128>}, {transform_indices = @transform_5, window_bounds = array<i64: 1, 16, 128>}]} {
    %cst = arith.constant 0.000000e+00 : f32
    %0 = vector.broadcast %cst : f32 to vector<1x3x176xf32>
    %c0 = arith.constant 0 : index
    %c0_0 = arith.constant 0 : index
    %c0_1 = arith.constant 0 : index
    %1 = vector.load %arg7[%c0, %c0_0, %c0_1] : memref<1x22x176xf32, #tpu.memory_space<vmem>>, vector<1x3x176xf32>
    tpu.vector_store %arg7[%c0, %c0_0, %c0_1], %0 {strides = array<i32>} : memref<1x22x176xf32, #tpu.memory_space<vmem>>, vector<1x3x176xf32>,
    %c0_2 = arith.constant 0 : index
    %c19 = arith.constant 19 : index
    %c0_3 = arith.constant 0 : index
    %2 = vector.load %arg7[%c0_2, %c19, %c0_3] : memref<1x22x176xf32, #tpu.memory_space<vmem>>, vector<1x3x176xf32>
    tpu.vector_store %arg7[%c0_2, %c19, %c0_3], %0 {strides = array<i32>} : memref<1x22x176xf32, #tpu.memory_space<vmem>>, vector<1x3x176xf32>,
    %cst_4 = arith.constant 0.000000e+00 : f32
    %3 = vector.broadcast %cst_4 : f32 to vector<1x16x24xf32>
    %c0_5 = arith.constant 0 : index
    %c3 = arith.constant 3 : index
    %c0_6 = arith.constant 0 : index
    %4 = vector.load %arg7[%c0_5, %c3, %c0_6] : memref<1x22x176xf32, #tpu.memory_space<vmem>>, vector<1x16x24xf32>
    tpu.vector_store %arg7[%c0_5, %c3, %c0_6], %3 {strides = array<i32>} : memref<1x22x176xf32, #tpu.memory_space<vmem>>, vector<1x16x24xf32>,
    %c0_7 = arith.constant 0 : index
    %c3_8 = arith.constant 3 : index
    %c152 = arith.constant 152 : index
    %5 = vector.load %arg7[%c0_7, %c3_8, %c152] : memref<1x22x176xf32, #tpu.memory_space<vmem>>, vector<1x16x24xf32>
    tpu.vector_store %arg7[%c0_7, %c3_8, %c152], %3 {strides = array<i32>} : memref<1x22x176xf32, #tpu.memory_space<vmem>>, vector<1x16x24xf32>,
    %c0_9 = arith.constant 0 : index
    %c0_10 = arith.constant 0 : index
    %c0_11 = arith.constant 0 : index
    %6 = vector.load %arg1[%c0_9, %c0_10, %c0_11] : memref<1x16x128xf32, #tpu.memory_space<vmem>>, vector<1x16x128xf32>
    %c0_12 = arith.constant 0 : index
    %c3_13 = arith.constant 3 : index
    %c24 = arith.constant 24 : index
    %7 = vector.load %arg7[%c0_12, %c3_13, %c24] : memref<1x22x176xf32, #tpu.memory_space<vmem>>, vector<1x16x128xf32>
    tpu.vector_store %arg7[%c0_12, %c3_13, %c24], %6 {strides = array<i32>} : memref<1x22x176xf32, #tpu.memory_space<vmem>>, vector<1x16x128xf32>,
    %c0_14 = arith.constant 0 : index
    %c0_15 = arith.constant 0 : index
    %8 = vector.load %arg2[%c0_14, %c0_15] : memref<49x128xf32, #tpu.memory_space<vmem>>, vector<49x128xf32>
    %c0_16 = arith.constant 0 : index
    %c0_17 = arith.constant 0 : index
    %9 = vector.load %arg3[%c0_16, %c0_17] : memref<1x128xf32, #tpu.memory_space<vmem>>, vector<1x128xf32>
    %10 = vector.shape_cast %9 : vector<1x128xf32> to vector<1x1x128xf32>
    %11 = vector.broadcast %10 : vector<1x1x128xf32> to vector<1x16x128xf32>
    %c0_18 = arith.constant 0 : index
    %c0_19 = arith.constant 0 : index
    %c0_20 = arith.constant 0 : index
    %12 = vector.load %arg7[%c0_18, %c0_19, %c0_20] : memref<1x22x176xf32, #tpu.memory_space<vmem>>, vector<1x22x128xf32>
    %c0_21 = arith.constant 0 : index
    %c0_22 = arith.constant 0 : index
    %c0_23 = arith.constant 0 : index
    %c0_24 = arith.constant 0 : index
    %13 = vector.load %arg8[%c0_21, %c0_22, %c0_23, %c0_24] : memref<2x1x22x128xf32, #tpu.memory_space<vmem>>, vector<1x1x22x128xf32>
    %14 = vector.shape_cast %13 : vector<1x1x22x128xf32> to vector<1x22x128xf32>
    %15 = vector.shape_cast %12 : vector<1x22x128xf32> to vector<1x1x22x128xf32>
    tpu.vector_store %arg8[%c0_21, %c0_22, %c0_23, %c0_24], %15 {strides = array<i32>} : memref<2x1x22x128xf32, #tpu.memory_space<vmem>>, vector<1x1x22x128xf32>,
    %16 = vector.extract_strided_slice %8 {offsets = [0, 0], sizes = [1, 128], strides = [1, 1]} : vector<49x128xf32> to vector<1x128xf32>
    %c0_25 = arith.constant 0 : index
    %c0_26 = arith.constant 0 : index
    %c0_27 = arith.constant 0 : index
    %c0_28 = arith.constant 0 : index
    %17 = vector.load %arg8[%c0_25, %c0_26, %c0_27, %c0_28] : memref<2x1x22x128xf32, #tpu.memory_space<vmem>>, vector<1x1x16x128xf32>
    %18 = vector.shape_cast %17 : vector<1x1x16x128xf32> to vector<1x16x128xf32>
    %19 = vector.shape_cast %16 : vector<1x128xf32> to vector<1x1x128xf32>
    %20 = vector.broadcast %19 : vector<1x1x128xf32> to vector<1x16x128xf32>
    %21 = arith.mulf %18, %20 : vector<1x16x128xf32>
    %22 = arith.addf %11, %21 : vector<1x16x128xf32>
    %23 = vector.extract_strided_slice %8 {offsets = [7, 0], sizes = [1, 128], strides = [1, 1]} : vector<49x128xf32> to vector<1x128xf32>
    %c0_29 = arith.constant 0 : index
    %c0_30 = arith.constant 0 : index
    %c1 = arith.constant 1 : index
    %c0_31 = arith.constant 0 : index
    %24 = vector.load %arg8[%c0_29, %c0_30, %c1, %c0_31] : memref<2x1x22x128xf32, #tpu.memory_space<vmem>>, vector<1x1x16x128xf32>
    %25 = vector.shape_cast %24 : vector<1x1x16x128xf32> to vector<1x16x128xf32>
    %26 = vector.shape_cast %23 : vector<1x128xf32> to vector<1x1x128xf32>
    %27 = vector.broadcast %26 : vector<1x1x128xf32> to vector<1x16x128xf32>
    %28 = arith.mulf %25, %27 : vector<1x16x128xf32>
    %29 = arith.addf %22, %28 : vector<1x16x128xf32>
    %30 = vector.extract_strided_slice %8 {offsets = [14, 0], sizes = [1, 128], strides = [1, 1]} : vector<49x128xf32> to vector<1x128xf32>
    %c0_32 = arith.constant 0 : index
    %c0_33 = arith.constant 0 : index
    %c2 = arith.constant 2 : index
    %c0_34 = arith.constant 0 : index
    %31 = vector.load %arg8[%c0_32, %c0_33, %c2, %c0_34] : memref<2x1x22x128xf32, #tpu.memory_space<vmem>>, vector<1x1x16x128xf32>
    %32 = vector.shape_cast %31 : vector<1x1x16x128xf32> to vector<1x16x128xf32>
    %33 = vector.shape_cast %30 : vector<1x128xf32> to vector<1x1x128xf32>
    %34 = vector.broadcast %33 : vector<1x1x128xf32> to vector<1x16x128xf32>
    %35 = arith.mulf %32, %34 : vector<1x16x128xf32>
    %36 = arith.addf %29, %35 : vector<1x16x128xf32>
    %37 = vector.extract_strided_slice %8 {offsets = [21, 0], sizes = [1, 128], strides = [1, 1]} : vector<49x128xf32> to vector<1x128xf32>
    %c0_35 = arith.constant 0 : index
    %c0_36 = arith.constant 0 : index
    %c3_37 = arith.constant 3 : index
    %c0_38 = arith.constant 0 : index
    %38 = vector.load %arg8[%c0_35, %c0_36, %c3_37, %c0_38] : memref<2x1x22x128xf32, #tpu.memory_space<vmem>>, vector<1x1x16x128xf32>
    %39 = vector.shape_cast %38 : vector<1x1x16x128xf32> to vector<1x16x128xf32>
    %40 = vector.shape_cast %37 : vector<1x128xf32> to vector<1x1x128xf32>
    %41 = vector.broadcast %40 : vector<1x1x128xf32> to vector<1x16x128xf32>
    %42 = arith.mulf %39, %41 : vector<1x16x128xf32>
    %43 = arith.addf %36, %42 : vector<1x16x128xf32>
    %44 = vector.extract_strided_slice %8 {offsets = [28, 0], sizes = [1, 128], strides = [1, 1]} : vector<49x128xf32> to vector<1x128xf32>
    %c0_39 = arith.constant 0 : index
    %c0_40 = arith.constant 0 : index
    %c4 = arith.constant 4 : index
    %c0_41 = arith.constant 0 : index
    %45 = vector.load %arg8[%c0_39, %c0_40, %c4, %c0_41] : memref<2x1x22x128xf32, #tpu.memory_space<vmem>>, vector<1x1x16x128xf32>
    %46 = vector.shape_cast %45 : vector<1x1x16x128xf32> to vector<1x16x128xf32>
    %47 = vector.shape_cast %44 : vector<1x128xf32> to vector<1x1x128xf32>
    %48 = vector.broadcast %47 : vector<1x1x128xf32> to vector<1x16x128xf32>
    %49 = arith.mulf %46, %48 : vector<1x16x128xf32>
    %50 = arith.addf %43, %49 : vector<1x16x128xf32>
    %51 = vector.extract_strided_slice %8 {offsets = [35, 0], sizes = [1, 128], strides = [1, 1]} : vector<49x128xf32> to vector<1x128xf32>
    %c0_42 = arith.constant 0 : index
    %c0_43 = arith.constant 0 : index
    %c5 = arith.constant 5 : index
    %c0_44 = arith.constant 0 : index
    %52 = vector.load %arg8[%c0_42, %c0_43, %c5, %c0_44] : memref<2x1x22x128xf32, #tpu.memory_space<vmem>>, vector<1x1x16x128xf32>
    %53 = vector.shape_cast %52 : vector<1x1x16x128xf32> to vector<1x16x128xf32>
    %54 = vector.shape_cast %51 : vector<1x128xf32> to vector<1x1x128xf32>
    %55 = vector.broadcast %54 : vector<1x1x128xf32> to vector<1x16x128xf32>
    %56 = arith.mulf %53, %55 : vector<1x16x128xf32>
    %57 = arith.addf %50, %56 : vector<1x16x128xf32>
    %58 = vector.extract_strided_slice %8 {offsets = [42, 0], sizes = [1, 128], strides = [1, 1]} : vector<49x128xf32> to vector<1x128xf32>
    %c0_45 = arith.constant 0 : index
    %c0_46 = arith.constant 0 : index
    %c6 = arith.constant 6 : index
    %c0_47 = arith.constant 0 : index
    %59 = vector.load %arg8[%c0_45, %c0_46, %c6, %c0_47] : memref<2x1x22x128xf32, #tpu.memory_space<vmem>>, vector<1x1x16x128xf32>
    %60 = vector.shape_cast %59 : vector<1x1x16x128xf32> to vector<1x16x128xf32>
    %61 = vector.shape_cast %58 : vector<1x128xf32> to vector<1x1x128xf32>
    %62 = vector.broadcast %61 : vector<1x1x128xf32> to vector<1x16x128xf32>
    %63 = arith.mulf %60, %62 : vector<1x16x128xf32>
    %64 = arith.addf %57, %63 : vector<1x16x128xf32>
    %c0_48 = arith.constant 0 : index
    %c0_49 = arith.constant 0 : index
    %c8 = arith.constant 8 : index
    %65 = vector.load %arg7[%c0_48, %c0_49, %c8] : memref<1x22x176xf32, #tpu.memory_space<vmem>>, vector<1x22x128xf32>
    %c1_50 = arith.constant 1 : index
    %c0_51 = arith.constant 0 : index
    %c0_52 = arith.constant 0 : index
    %c0_53 = arith.constant 0 : index
    %66 = vector.load %arg8[%c1_50, %c0_51, %c0_52, %c0_53] : memref<2x1x22x128xf32, #tpu.memory_space<vmem>>, vector<1x1x22x128xf32>
    %67 = vector.shape_cast %66 : vector<1x1x22x128xf32> to vector<1x22x128xf32>
    %68 = vector.shape_cast %65 : vector<1x22x128xf32> to vector<1x1x22x128xf32>
    tpu.vector_store %arg8[%c1_50, %c0_51, %c0_52, %c0_53], %68 {strides = array<i32>} : memref<2x1x22x128xf32, #tpu.memory_space<vmem>>, vector<1x1x22x128xf32>,
    %69 = vector.extract_strided_slice %8 {offsets = [1, 0], sizes = [1, 128], strides = [1, 1]} : vector<49x128xf32> to vector<1x128xf32>
    %c1_54 = arith.constant 1 : index
    %c0_55 = arith.constant 0 : index
    %c0_56 = arith.constant 0 : index
    %c0_57 = arith.constant 0 : index
    %70 = vector.load %arg8[%c1_54, %c0_55, %c0_56, %c0_57] : memref<2x1x22x128xf32, #tpu.memory_space<vmem>>, vector<1x1x16x128xf32>
    %71 = vector.shape_cast %70 : vector<1x1x16x128xf32> to vector<1x16x128xf32>
    %72 = vector.shape_cast %69 : vector<1x128xf32> to vector<1x1x128xf32>
    %73 = vector.broadcast %72 : vector<1x1x128xf32> to vector<1x16x128xf32>
    %74 = arith.mulf %71, %73 : vector<1x16x128xf32>
    %75 = arith.addf %64, %74 : vector<1x16x128xf32>
    %76 = vector.extract_strided_slice %8 {offsets = [8, 0], sizes = [1, 128], strides = [1, 1]} : vector<49x128xf32> to vector<1x128xf32>
    %c1_58 = arith.constant 1 : index
    %c0_59 = arith.constant 0 : index
    %c1_60 = arith.constant 1 : index
    %c0_61 = arith.constant 0 : index
    %77 = vector.load %arg8[%c1_58, %c0_59, %c1_60, %c0_61] : memref<2x1x22x128xf32, #tpu.memory_space<vmem>>, vector<1x1x16x128xf32>
    %78 = vector.shape_cast %77 : vector<1x1x16x128xf32> to vector<1x16x128xf32>
    %79 = vector.shape_cast %76 : vector<1x128xf32> to vector<1x1x128xf32>
    %80 = vector.broadcast %79 : vector<1x1x128xf32> to vector<1x16x128xf32>
    %81 = arith.mulf %78, %80 : vector<1x16x128xf32>
    %82 = arith.addf %75, %81 : vector<1x16x128xf32>
    %83 = vector.extract_strided_slice %8 {offsets = [15, 0], sizes = [1, 128], strides = [1, 1]} : vector<49x128xf32> to vector<1x128xf32>
    %c1_62 = arith.constant 1 : index
    %c0_63 = arith.constant 0 : index
    %c2_64 = arith.constant 2 : index
    %c0_65 = arith.constant 0 : index
    %84 = vector.load %arg8[%c1_62, %c0_63, %c2_64, %c0_65] : memref<2x1x22x128xf32, #tpu.memory_space<vmem>>, vector<1x1x16x128xf32>
    %85 = vector.shape_cast %84 : vector<1x1x16x128xf32> to vector<1x16x128xf32>
    %86 = vector.shape_cast %83 : vector<1x128xf32> to vector<1x1x128xf32>
    %87 = vector.broadcast %86 : vector<1x1x128xf32> to vector<1x16x128xf32>
    %88 = arith.mulf %85, %87 : vector<1x16x128xf32>
    %89 = arith.addf %82, %88 : vector<1x16x128xf32>
    %90 = vector.extract_strided_slice %8 {offsets = [22, 0], sizes = [1, 128], strides = [1, 1]} : vector<49x128xf32> to vector<1x128xf32>
    %c1_66 = arith.constant 1 : index
    %c0_67 = arith.constant 0 : index
    %c3_68 = arith.constant 3 : index
    %c0_69 = arith.constant 0 : index
    %91 = vector.load %arg8[%c1_66, %c0_67, %c3_68, %c0_69] : memref<2x1x22x128xf32, #tpu.memory_space<vmem>>, vector<1x1x16x128xf32>
    %92 = vector.shape_cast %91 : vector<1x1x16x128xf32> to vector<1x16x128xf32>
    %93 = vector.shape_cast %90 : vector<1x128xf32> to vector<1x1x128xf32>
    %94 = vector.broadcast %93 : vector<1x1x128xf32> to vector<1x16x128xf32>
    %95 = arith.mulf %92, %94 : vector<1x16x128xf32>
    %96 = arith.addf %89, %95 : vector<1x16x128xf32>
    %97 = vector.extract_strided_slice %8 {offsets = [29, 0], sizes = [1, 128], strides = [1, 1]} : vector<49x128xf32> to vector<1x128xf32>
    %c1_70 = arith.constant 1 : index
    %c0_71 = arith.constant 0 : index
    %c4_72 = arith.constant 4 : index
    %c0_73 = arith.constant 0 : index
    %98 = vector.load %arg8[%c1_70, %c0_71, %c4_72, %c0_73] : memref<2x1x22x128xf32, #tpu.memory_space<vmem>>, vector<1x1x16x128xf32>
    %99 = vector.shape_cast %98 : vector<1x1x16x128xf32> to vector<1x16x128xf32>
    %100 = vector.shape_cast %97 : vector<1x128xf32> to vector<1x1x128xf32>
    %101 = vector.broadcast %100 : vector<1x1x128xf32> to vector<1x16x128xf32>
    %102 = arith.mulf %99, %101 : vector<1x16x128xf32>
    %103 = arith.addf %96, %102 : vector<1x16x128xf32>
    %104 = vector.extract_strided_slice %8 {offsets = [36, 0], sizes = [1, 128], strides = [1, 1]} : vector<49x128xf32> to vector<1x128xf32>
    %c1_74 = arith.constant 1 : index
    %c0_75 = arith.constant 0 : index
    %c5_76 = arith.constant 5 : index
    %c0_77 = arith.constant 0 : index
    %105 = vector.load %arg8[%c1_74, %c0_75, %c5_76, %c0_77] : memref<2x1x22x128xf32, #tpu.memory_space<vmem>>, vector<1x1x16x128xf32>
    %106 = vector.shape_cast %105 : vector<1x1x16x128xf32> to vector<1x16x128xf32>
    %107 = vector.shape_cast %104 : vector<1x128xf32> to vector<1x1x128xf32>
    %108 = vector.broadcast %107 : vector<1x1x128xf32> to vector<1x16x128xf32>
    %109 = arith.mulf %106, %108 : vector<1x16x128xf32>
    %110 = arith.addf %103, %109 : vector<1x16x128xf32>
    %111 = vector.extract_strided_slice %8 {offsets = [43, 0], sizes = [1, 128], strides = [1, 1]} : vector<49x128xf32> to vector<1x128xf32>
    %c1_78 = arith.constant 1 : index
    %c0_79 = arith.constant 0 : index
    %c6_80 = arith.constant 6 : index
    %c0_81 = arith.constant 0 : index
    %112 = vector.load %arg8[%c1_78, %c0_79, %c6_80, %c0_81] : memref<2x1x22x128xf32, #tpu.memory_space<vmem>>, vector<1x1x16x128xf32>
    %113 = vector.shape_cast %112 : vector<1x1x16x128xf32> to vector<1x16x128xf32>
    %114 = vector.shape_cast %111 : vector<1x128xf32> to vector<1x1x128xf32>
    %115 = vector.broadcast %114 : vector<1x1x128xf32> to vector<1x16x128xf32>
    %116 = arith.mulf %113, %115 : vector<1x16x128xf32>
    %117 = arith.addf %110, %116 : vector<1x16x128xf32>
    %c0_82 = arith.constant 0 : index
    %c0_83 = arith.constant 0 : index
    %c16 = arith.constant 16 : index
    %118 = vector.load %arg7[%c0_82, %c0_83, %c16] : memref<1x22x176xf32, #tpu.memory_space<vmem>>, vector<1x22x128xf32>
    %c0_84 = arith.constant 0 : index
    %c0_85 = arith.constant 0 : index
    %c0_86 = arith.constant 0 : index
    %c0_87 = arith.constant 0 : index
    %119 = vector.load %arg8[%c0_84, %c0_85, %c0_86, %c0_87] : memref<2x1x22x128xf32, #tpu.memory_space<vmem>>, vector<1x1x22x128xf32>
    %120 = vector.shape_cast %119 : vector<1x1x22x128xf32> to vector<1x22x128xf32>
    %121 = vector.shape_cast %118 : vector<1x22x128xf32> to vector<1x1x22x128xf32>
    tpu.vector_store %arg8[%c0_84, %c0_85, %c0_86, %c0_87], %121 {strides = array<i32>} : memref<2x1x22x128xf32, #tpu.memory_space<vmem>>, vector<1x1x22x128xf32>,
    %122 = vector.extract_strided_slice %8 {offsets = [2, 0], sizes = [1, 128], strides = [1, 1]} : vector<49x128xf32> to vector<1x128xf32>
    %c0_88 = arith.constant 0 : index
    %c0_89 = arith.constant 0 : index
    %c0_90 = arith.constant 0 : index
    %c0_91 = arith.constant 0 : index
    %123 = vector.load %arg8[%c0_88, %c0_89, %c0_90, %c0_91] : memref<2x1x22x128xf32, #tpu.memory_space<vmem>>, vector<1x1x16x128xf32>
    %124 = vector.shape_cast %123 : vector<1x1x16x128xf32> to vector<1x16x128xf32>
    %125 = vector.shape_cast %122 : vector<1x128xf32> to vector<1x1x128xf32>
    %126 = vector.broadcast %125 : vector<1x1x128xf32> to vector<1x16x128xf32>
    %127 = arith.mulf %124, %126 : vector<1x16x128xf32>
    %128 = arith.addf %117, %127 : vector<1x16x128xf32>
    %129 = vector.extract_strided_slice %8 {offsets = [9, 0], sizes = [1, 128], strides = [1, 1]} : vector<49x128xf32> to vector<1x128xf32>
    %c0_92 = arith.constant 0 : index
    %c0_93 = arith.constant 0 : index
    %c1_94 = arith.constant 1 : index
    %c0_95 = arith.constant 0 : index
    %130 = vector.load %arg8[%c0_92, %c0_93, %c1_94, %c0_95] : memref<2x1x22x128xf32, #tpu.memory_space<vmem>>, vector<1x1x16x128xf32>
    %131 = vector.shape_cast %130 : vector<1x1x16x128xf32> to vector<1x16x128xf32>
    %132 = vector.shape_cast %129 : vector<1x128xf32> to vector<1x1x128xf32>
    %133 = vector.broadcast %132 : vector<1x1x128xf32> to vector<1x16x128xf32>
    %134 = arith.mulf %131, %133 : vector<1x16x128xf32>
    %135 = arith.addf %128, %134 : vector<1x16x128xf32>
    %136 = vector.extract_strided_slice %8 {offsets = [16, 0], sizes = [1, 128], strides = [1, 1]} : vector<49x128xf32> to vector<1x128xf32>
    %c0_96 = arith.constant 0 : index
    %c0_97 = arith.constant 0 : index
    %c2_98 = arith.constant 2 : index
    %c0_99 = arith.constant 0 : index
    %137 = vector.load %arg8[%c0_96, %c0_97, %c2_98, %c0_99] : memref<2x1x22x128xf32, #tpu.memory_space<vmem>>, vector<1x1x16x128xf32>
    %138 = vector.shape_cast %137 : vector<1x1x16x128xf32> to vector<1x16x128xf32>
    %139 = vector.shape_cast %136 : vector<1x128xf32> to vector<1x1x128xf32>
    %140 = vector.broadcast %139 : vector<1x1x128xf32> to vector<1x16x128xf32>
    %141 = arith.mulf %138, %140 : vector<1x16x128xf32>
    %142 = arith.addf %135, %141 : vector<1x16x128xf32>
    %143 = vector.extract_strided_slice %8 {offsets = [23, 0], sizes = [1, 128], strides = [1, 1]} : vector<49x128xf32> to vector<1x128xf32>
    %c0_100 = arith.constant 0 : index
    %c0_101 = arith.constant 0 : index
    %c3_102 = arith.constant 3 : index
    %c0_103 = arith.constant 0 : index
    %144 = vector.load %arg8[%c0_100, %c0_101, %c3_102, %c0_103] : memref<2x1x22x128xf32, #tpu.memory_space<vmem>>, vector<1x1x16x128xf32>
    %145 = vector.shape_cast %144 : vector<1x1x16x128xf32> to vector<1x16x128xf32>
    %146 = vector.shape_cast %143 : vector<1x128xf32> to vector<1x1x128xf32>
    %147 = vector.broadcast %146 : vector<1x1x128xf32> to vector<1x16x128xf32>
    %148 = arith.mulf %145, %147 : vector<1x16x128xf32>
    %149 = arith.addf %142, %148 : vector<1x16x128xf32>
    %150 = vector.extract_strided_slice %8 {offsets = [30, 0], sizes = [1, 128], strides = [1, 1]} : vector<49x128xf32> to vector<1x128xf32>
    %c0_104 = arith.constant 0 : index
    %c0_105 = arith.constant 0 : index
    %c4_106 = arith.constant 4 : index
    %c0_107 = arith.constant 0 : index
    %151 = vector.load %arg8[%c0_104, %c0_105, %c4_106, %c0_107] : memref<2x1x22x128xf32, #tpu.memory_space<vmem>>, vector<1x1x16x128xf32>
    %152 = vector.shape_cast %151 : vector<1x1x16x128xf32> to vector<1x16x128xf32>
    %153 = vector.shape_cast %150 : vector<1x128xf32> to vector<1x1x128xf32>
    %154 = vector.broadcast %153 : vector<1x1x128xf32> to vector<1x16x128xf32>
    %155 = arith.mulf %152, %154 : vector<1x16x128xf32>
    %156 = arith.addf %149, %155 : vector<1x16x128xf32>
    %157 = vector.extract_strided_slice %8 {offsets = [37, 0], sizes = [1, 128], strides = [1, 1]} : vector<49x128xf32> to vector<1x128xf32>
    %c0_108 = arith.constant 0 : index
    %c0_109 = arith.constant 0 : index
    %c5_110 = arith.constant 5 : index
    %c0_111 = arith.constant 0 : index
    %158 = vector.load %arg8[%c0_108, %c0_109, %c5_110, %c0_111] : memref<2x1x22x128xf32, #tpu.memory_space<vmem>>, vector<1x1x16x128xf32>
    %159 = vector.shape_cast %158 : vector<1x1x16x128xf32> to vector<1x16x128xf32>
    %160 = vector.shape_cast %157 : vector<1x128xf32> to vector<1x1x128xf32>
    %161 = vector.broadcast %160 : vector<1x1x128xf32> to vector<1x16x128xf32>
    %162 = arith.mulf %159, %161 : vector<1x16x128xf32>
    %163 = arith.addf %156, %162 : vector<1x16x128xf32>
    %164 = vector.extract_strided_slice %8 {offsets = [44, 0], sizes = [1, 128], strides = [1, 1]} : vector<49x128xf32> to vector<1x128xf32>
    %c0_112 = arith.constant 0 : index
    %c0_113 = arith.constant 0 : index
    %c6_114 = arith.constant 6 : index
    %c0_115 = arith.constant 0 : index
    %165 = vector.load %arg8[%c0_112, %c0_113, %c6_114, %c0_115] : memref<2x1x22x128xf32, #tpu.memory_space<vmem>>, vector<1x1x16x128xf32>
    %166 = vector.shape_cast %165 : vector<1x1x16x128xf32> to vector<1x16x128xf32>
    %167 = vector.shape_cast %164 : vector<1x128xf32> to vector<1x1x128xf32>
    %168 = vector.broadcast %167 : vector<1x1x128xf32> to vector<1x16x128xf32>
    %169 = arith.mulf %166, %168 : vector<1x16x128xf32>
    %170 = arith.addf %163, %169 : vector<1x16x128xf32>
    %c0_116 = arith.constant 0 : index
    %c0_117 = arith.constant 0 : index
    %c24_118 = arith.constant 24 : index
    %171 = vector.load %arg7[%c0_116, %c0_117, %c24_118] : memref<1x22x176xf32, #tpu.memory_space<vmem>>, vector<1x22x128xf32>
    %c1_119 = arith.constant 1 : index
    %c0_120 = arith.constant 0 : index
    %c0_121 = arith.constant 0 : index
    %c0_122 = arith.constant 0 : index
    %172 = vector.load %arg8[%c1_119, %c0_120, %c0_121, %c0_122] : memref<2x1x22x128xf32, #tpu.memory_space<vmem>>, vector<1x1x22x128xf32>
    %173 = vector.shape_cast %172 : vector<1x1x22x128xf32> to vector<1x22x128xf32>
    %174 = vector.shape_cast %171 : vector<1x22x128xf32> to vector<1x1x22x128xf32>
    tpu.vector_store %arg8[%c1_119, %c0_120, %c0_121, %c0_122], %174 {strides = array<i32>} : memref<2x1x22x128xf32, #tpu.memory_space<vmem>>, vector<1x1x22x128xf32>,
    %175 = vector.extract_strided_slice %8 {offsets = [3, 0], sizes = [1, 128], strides = [1, 1]} : vector<49x128xf32> to vector<1x128xf32>
    %c1_123 = arith.constant 1 : index
    %c0_124 = arith.constant 0 : index
    %c0_125 = arith.constant 0 : index
    %c0_126 = arith.constant 0 : index
    %176 = vector.load %arg8[%c1_123, %c0_124, %c0_125, %c0_126] : memref<2x1x22x128xf32, #tpu.memory_space<vmem>>, vector<1x1x16x128xf32>
    %177 = vector.shape_cast %176 : vector<1x1x16x128xf32> to vector<1x16x128xf32>
    %178 = vector.shape_cast %175 : vector<1x128xf32> to vector<1x1x128xf32>
    %179 = vector.broadcast %178 : vector<1x1x128xf32> to vector<1x16x128xf32>
    %180 = arith.mulf %177, %179 : vector<1x16x128xf32>
    %181 = arith.addf %170, %180 : vector<1x16x128xf32>
    %182 = vector.extract_strided_slice %8 {offsets = [10, 0], sizes = [1, 128], strides = [1, 1]} : vector<49x128xf32> to vector<1x128xf32>
    %c1_127 = arith.constant 1 : index
    %c0_128 = arith.constant 0 : index
    %c1_129 = arith.constant 1 : index
    %c0_130 = arith.constant 0 : index
    %183 = vector.load %arg8[%c1_127, %c0_128, %c1_129, %c0_130] : memref<2x1x22x128xf32, #tpu.memory_space<vmem>>, vector<1x1x16x128xf32>
    %184 = vector.shape_cast %183 : vector<1x1x16x128xf32> to vector<1x16x128xf32>
    %185 = vector.shape_cast %182 : vector<1x128xf32> to vector<1x1x128xf32>
    %186 = vector.broadcast %185 : vector<1x1x128xf32> to vector<1x16x128xf32>
    %187 = arith.mulf %184, %186 : vector<1x16x128xf32>
    %188 = arith.addf %181, %187 : vector<1x16x128xf32>
    %189 = vector.extract_strided_slice %8 {offsets = [17, 0], sizes = [1, 128], strides = [1, 1]} : vector<49x128xf32> to vector<1x128xf32>
    %c1_131 = arith.constant 1 : index
    %c0_132 = arith.constant 0 : index
    %c2_133 = arith.constant 2 : index
    %c0_134 = arith.constant 0 : index
    %190 = vector.load %arg8[%c1_131, %c0_132, %c2_133, %c0_134] : memref<2x1x22x128xf32, #tpu.memory_space<vmem>>, vector<1x1x16x128xf32>
    %191 = vector.shape_cast %190 : vector<1x1x16x128xf32> to vector<1x16x128xf32>
    %192 = vector.shape_cast %189 : vector<1x128xf32> to vector<1x1x128xf32>
    %193 = vector.broadcast %192 : vector<1x1x128xf32> to vector<1x16x128xf32>
    %194 = arith.mulf %191, %193 : vector<1x16x128xf32>
    %195 = arith.addf %188, %194 : vector<1x16x128xf32>
    %196 = vector.extract_strided_slice %8 {offsets = [24, 0], sizes = [1, 128], strides = [1, 1]} : vector<49x128xf32> to vector<1x128xf32>
    %c1_135 = arith.constant 1 : index
    %c0_136 = arith.constant 0 : index
    %c3_137 = arith.constant 3 : index
    %c0_138 = arith.constant 0 : index
    %197 = vector.load %arg8[%c1_135, %c0_136, %c3_137, %c0_138] : memref<2x1x22x128xf32, #tpu.memory_space<vmem>>, vector<1x1x16x128xf32>
    %198 = vector.shape_cast %197 : vector<1x1x16x128xf32> to vector<1x16x128xf32>
    %199 = vector.shape_cast %196 : vector<1x128xf32> to vector<1x1x128xf32>
    %200 = vector.broadcast %199 : vector<1x1x128xf32> to vector<1x16x128xf32>
    %201 = arith.mulf %198, %200 : vector<1x16x128xf32>
    %202 = arith.addf %195, %201 : vector<1x16x128xf32>
    %203 = vector.extract_strided_slice %8 {offsets = [31, 0], sizes = [1, 128], strides = [1, 1]} : vector<49x128xf32> to vector<1x128xf32>
    %c1_139 = arith.constant 1 : index
    %c0_140 = arith.constant 0 : index
    %c4_141 = arith.constant 4 : index
    %c0_142 = arith.constant 0 : index
    %204 = vector.load %arg8[%c1_139, %c0_140, %c4_141, %c0_142] : memref<2x1x22x128xf32, #tpu.memory_space<vmem>>, vector<1x1x16x128xf32>
    %205 = vector.shape_cast %204 : vector<1x1x16x128xf32> to vector<1x16x128xf32>
    %206 = vector.shape_cast %203 : vector<1x128xf32> to vector<1x1x128xf32>
    %207 = vector.broadcast %206 : vector<1x1x128xf32> to vector<1x16x128xf32>
    %208 = arith.mulf %205, %207 : vector<1x16x128xf32>
    %209 = arith.addf %202, %208 : vector<1x16x128xf32>
    %210 = vector.extract_strided_slice %8 {offsets = [38, 0], sizes = [1, 128], strides = [1, 1]} : vector<49x128xf32> to vector<1x128xf32>
    %c1_143 = arith.constant 1 : index
    %c0_144 = arith.constant 0 : index
    %c5_145 = arith.constant 5 : index
    %c0_146 = arith.constant 0 : index
    %211 = vector.load %arg8[%c1_143, %c0_144, %c5_145, %c0_146] : memref<2x1x22x128xf32, #tpu.memory_space<vmem>>, vector<1x1x16x128xf32>
    %212 = vector.shape_cast %211 : vector<1x1x16x128xf32> to vector<1x16x128xf32>
    %213 = vector.shape_cast %210 : vector<1x128xf32> to vector<1x1x128xf32>
    %214 = vector.broadcast %213 : vector<1x1x128xf32> to vector<1x16x128xf32>
    %215 = arith.mulf %212, %214 : vector<1x16x128xf32>
    %216 = arith.addf %209, %215 : vector<1x16x128xf32>
    %217 = vector.extract_strided_slice %8 {offsets = [45, 0], sizes = [1, 128], strides = [1, 1]} : vector<49x128xf32> to vector<1x128xf32>
    %c1_147 = arith.constant 1 : index
    %c0_148 = arith.constant 0 : index
    %c6_149 = arith.constant 6 : index
    %c0_150 = arith.constant 0 : index
    %218 = vector.load %arg8[%c1_147, %c0_148, %c6_149, %c0_150] : memref<2x1x22x128xf32, #tpu.memory_space<vmem>>, vector<1x1x16x128xf32>
    %219 = vector.shape_cast %218 : vector<1x1x16x128xf32> to vector<1x16x128xf32>
    %220 = vector.shape_cast %217 : vector<1x128xf32> to vector<1x1x128xf32>
    %221 = vector.broadcast %220 : vector<1x1x128xf32> to vector<1x16x128xf32>
    %222 = arith.mulf %219, %221 : vector<1x16x128xf32>
    %223 = arith.addf %216, %222 : vector<1x16x128xf32>
    %c0_151 = arith.constant 0 : index
    %c0_152 = arith.constant 0 : index
    %c32 = arith.constant 32 : index
    %224 = vector.load %arg7[%c0_151, %c0_152, %c32] : memref<1x22x176xf32, #tpu.memory_space<vmem>>, vector<1x22x128xf32>
    %c0_153 = arith.constant 0 : index
    %c0_154 = arith.constant 0 : index
    %c0_155 = arith.constant 0 : index
    %c0_156 = arith.constant 0 : index
    %225 = vector.load %arg8[%c0_153, %c0_154, %c0_155, %c0_156] : memref<2x1x22x128xf32, #tpu.memory_space<vmem>>, vector<1x1x22x128xf32>
    %226 = vector.shape_cast %225 : vector<1x1x22x128xf32> to vector<1x22x128xf32>
    %227 = vector.shape_cast %224 : vector<1x22x128xf32> to vector<1x1x22x128xf32>
    tpu.vector_store %arg8[%c0_153, %c0_154, %c0_155, %c0_156], %227 {strides = array<i32>} : memref<2x1x22x128xf32, #tpu.memory_space<vmem>>, vector<1x1x22x128xf32>,
    %228 = vector.extract_strided_slice %8 {offsets = [4, 0], sizes = [1, 128], strides = [1, 1]} : vector<49x128xf32> to vector<1x128xf32>
    %c0_157 = arith.constant 0 : index
    %c0_158 = arith.constant 0 : index
    %c0_159 = arith.constant 0 : index
    %c0_160 = arith.constant 0 : index
    %229 = vector.load %arg8[%c0_157, %c0_158, %c0_159, %c0_160] : memref<2x1x22x128xf32, #tpu.memory_space<vmem>>, vector<1x1x16x128xf32>
    %230 = vector.shape_cast %229 : vector<1x1x16x128xf32> to vector<1x16x128xf32>
    %231 = vector.shape_cast %228 : vector<1x128xf32> to vector<1x1x128xf32>
    %232 = vector.broadcast %231 : vector<1x1x128xf32> to vector<1x16x128xf32>
    %233 = arith.mulf %230, %232 : vector<1x16x128xf32>
    %234 = arith.addf %223, %233 : vector<1x16x128xf32>
    %235 = vector.extract_strided_slice %8 {offsets = [11, 0], sizes = [1, 128], strides = [1, 1]} : vector<49x128xf32> to vector<1x128xf32>
    %c0_161 = arith.constant 0 : index
    %c0_162 = arith.constant 0 : index
    %c1_163 = arith.constant 1 : index
    %c0_164 = arith.constant 0 : index
    %236 = vector.load %arg8[%c0_161, %c0_162, %c1_163, %c0_164] : memref<2x1x22x128xf32, #tpu.memory_space<vmem>>, vector<1x1x16x128xf32>
    %237 = vector.shape_cast %236 : vector<1x1x16x128xf32> to vector<1x16x128xf32>
    %238 = vector.shape_cast %235 : vector<1x128xf32> to vector<1x1x128xf32>
    %239 = vector.broadcast %238 : vector<1x1x128xf32> to vector<1x16x128xf32>
    %240 = arith.mulf %237, %239 : vector<1x16x128xf32>
    %241 = arith.addf %234, %240 : vector<1x16x128xf32>
    %242 = vector.extract_strided_slice %8 {offsets = [18, 0], sizes = [1, 128], strides = [1, 1]} : vector<49x128xf32> to vector<1x128xf32>
    %c0_165 = arith.constant 0 : index
    %c0_166 = arith.constant 0 : index
    %c2_167 = arith.constant 2 : index
    %c0_168 = arith.constant 0 : index
    %243 = vector.load %arg8[%c0_165, %c0_166, %c2_167, %c0_168] : memref<2x1x22x128xf32, #tpu.memory_space<vmem>>, vector<1x1x16x128xf32>
    %244 = vector.shape_cast %243 : vector<1x1x16x128xf32> to vector<1x16x128xf32>
    %245 = vector.shape_cast %242 : vector<1x128xf32> to vector<1x1x128xf32>
    %246 = vector.broadcast %245 : vector<1x1x128xf32> to vector<1x16x128xf32>
    %247 = arith.mulf %244, %246 : vector<1x16x128xf32>
    %248 = arith.addf %241, %247 : vector<1x16x128xf32>
    %249 = vector.extract_strided_slice %8 {offsets = [25, 0], sizes = [1, 128], strides = [1, 1]} : vector<49x128xf32> to vector<1x128xf32>
    %c0_169 = arith.constant 0 : index
    %c0_170 = arith.constant 0 : index
    %c3_171 = arith.constant 3 : index
    %c0_172 = arith.constant 0 : index
    %250 = vector.load %arg8[%c0_169, %c0_170, %c3_171, %c0_172] : memref<2x1x22x128xf32, #tpu.memory_space<vmem>>, vector<1x1x16x128xf32>
    %251 = vector.shape_cast %250 : vector<1x1x16x128xf32> to vector<1x16x128xf32>
    %252 = vector.shape_cast %249 : vector<1x128xf32> to vector<1x1x128xf32>
    %253 = vector.broadcast %252 : vector<1x1x128xf32> to vector<1x16x128xf32>
    %254 = arith.mulf %251, %253 : vector<1x16x128xf32>
    %255 = arith.addf %248, %254 : vector<1x16x128xf32>
    %256 = vector.extract_strided_slice %8 {offsets = [32, 0], sizes = [1, 128], strides = [1, 1]} : vector<49x128xf32> to vector<1x128xf32>
    %c0_173 = arith.constant 0 : index
    %c0_174 = arith.constant 0 : index
    %c4_175 = arith.constant 4 : index
    %c0_176 = arith.constant 0 : index
    %257 = vector.load %arg8[%c0_173, %c0_174, %c4_175, %c0_176] : memref<2x1x22x128xf32, #tpu.memory_space<vmem>>, vector<1x1x16x128xf32>
    %258 = vector.shape_cast %257 : vector<1x1x16x128xf32> to vector<1x16x128xf32>
    %259 = vector.shape_cast %256 : vector<1x128xf32> to vector<1x1x128xf32>
    %260 = vector.broadcast %259 : vector<1x1x128xf32> to vector<1x16x128xf32>
    %261 = arith.mulf %258, %260 : vector<1x16x128xf32>
    %262 = arith.addf %255, %261 : vector<1x16x128xf32>
    %263 = vector.extract_strided_slice %8 {offsets = [39, 0], sizes = [1, 128], strides = [1, 1]} : vector<49x128xf32> to vector<1x128xf32>
    %c0_177 = arith.constant 0 : index
    %c0_178 = arith.constant 0 : index
    %c5_179 = arith.constant 5 : index
    %c0_180 = arith.constant 0 : index
    %264 = vector.load %arg8[%c0_177, %c0_178, %c5_179, %c0_180] : memref<2x1x22x128xf32, #tpu.memory_space<vmem>>, vector<1x1x16x128xf32>
    %265 = vector.shape_cast %264 : vector<1x1x16x128xf32> to vector<1x16x128xf32>
    %266 = vector.shape_cast %263 : vector<1x128xf32> to vector<1x1x128xf32>
    %267 = vector.broadcast %266 : vector<1x1x128xf32> to vector<1x16x128xf32>
    %268 = arith.mulf %265, %267 : vector<1x16x128xf32>
    %269 = arith.addf %262, %268 : vector<1x16x128xf32>
    %270 = vector.extract_strided_slice %8 {offsets = [46, 0], sizes = [1, 128], strides = [1, 1]} : vector<49x128xf32> to vector<1x128xf32>
    %c0_181 = arith.constant 0 : index
    %c0_182 = arith.constant 0 : index
    %c6_183 = arith.constant 6 : index
    %c0_184 = arith.constant 0 : index
    %271 = vector.load %arg8[%c0_181, %c0_182, %c6_183, %c0_184] : memref<2x1x22x128xf32, #tpu.memory_space<vmem>>, vector<1x1x16x128xf32>
    %272 = vector.shape_cast %271 : vector<1x1x16x128xf32> to vector<1x16x128xf32>
    %273 = vector.shape_cast %270 : vector<1x128xf32> to vector<1x1x128xf32>
    %274 = vector.broadcast %273 : vector<1x1x128xf32> to vector<1x16x128xf32>
    %275 = arith.mulf %272, %274 : vector<1x16x128xf32>
    %276 = arith.addf %269, %275 : vector<1x16x128xf32>
    %c0_185 = arith.constant 0 : index
    %c0_186 = arith.constant 0 : index
    %c40 = arith.constant 40 : index
    %277 = vector.load %arg7[%c0_185, %c0_186, %c40] : memref<1x22x176xf32, #tpu.memory_space<vmem>>, vector<1x22x128xf32>
    %c1_187 = arith.constant 1 : index
    %c0_188 = arith.constant 0 : index
    %c0_189 = arith.constant 0 : index
    %c0_190 = arith.constant 0 : index
    %278 = vector.load %arg8[%c1_187, %c0_188, %c0_189, %c0_190] : memref<2x1x22x128xf32, #tpu.memory_space<vmem>>, vector<1x1x22x128xf32>
    %279 = vector.shape_cast %278 : vector<1x1x22x128xf32> to vector<1x22x128xf32>
    %280 = vector.shape_cast %277 : vector<1x22x128xf32> to vector<1x1x22x128xf32>
    tpu.vector_store %arg8[%c1_187, %c0_188, %c0_189, %c0_190], %280 {strides = array<i32>} : memref<2x1x22x128xf32, #tpu.memory_space<vmem>>, vector<1x1x22x128xf32>,
    %281 = vector.extract_strided_slice %8 {offsets = [5, 0], sizes = [1, 128], strides = [1, 1]} : vector<49x128xf32> to vector<1x128xf32>
    %c1_191 = arith.constant 1 : index
    %c0_192 = arith.constant 0 : index
    %c0_193 = arith.constant 0 : index
    %c0_194 = arith.constant 0 : index
    %282 = vector.load %arg8[%c1_191, %c0_192, %c0_193, %c0_194] : memref<2x1x22x128xf32, #tpu.memory_space<vmem>>, vector<1x1x16x128xf32>
    %283 = vector.shape_cast %282 : vector<1x1x16x128xf32> to vector<1x16x128xf32>
    %284 = vector.shape_cast %281 : vector<1x128xf32> to vector<1x1x128xf32>
    %285 = vector.broadcast %284 : vector<1x1x128xf32> to vector<1x16x128xf32>
    %286 = arith.mulf %283, %285 : vector<1x16x128xf32>
    %287 = arith.addf %276, %286 : vector<1x16x128xf32>
    %288 = vector.extract_strided_slice %8 {offsets = [12, 0], sizes = [1, 128], strides = [1, 1]} : vector<49x128xf32> to vector<1x128xf32>
    %c1_195 = arith.constant 1 : index
    %c0_196 = arith.constant 0 : index
    %c1_197 = arith.constant 1 : index
    %c0_198 = arith.constant 0 : index
    %289 = vector.load %arg8[%c1_195, %c0_196, %c1_197, %c0_198] : memref<2x1x22x128xf32, #tpu.memory_space<vmem>>, vector<1x1x16x128xf32>
    %290 = vector.shape_cast %289 : vector<1x1x16x128xf32> to vector<1x16x128xf32>
    %291 = vector.shape_cast %288 : vector<1x128xf32> to vector<1x1x128xf32>
    %292 = vector.broadcast %291 : vector<1x1x128xf32> to vector<1x16x128xf32>
    %293 = arith.mulf %290, %292 : vector<1x16x128xf32>
    %294 = arith.addf %287, %293 : vector<1x16x128xf32>
    %295 = vector.extract_strided_slice %8 {offsets = [19, 0], sizes = [1, 128], strides = [1, 1]} : vector<49x128xf32> to vector<1x128xf32>
    %c1_199 = arith.constant 1 : index
    %c0_200 = arith.constant 0 : index
    %c2_201 = arith.constant 2 : index
    %c0_202 = arith.constant 0 : index
    %296 = vector.load %arg8[%c1_199, %c0_200, %c2_201, %c0_202] : memref<2x1x22x128xf32, #tpu.memory_space<vmem>>, vector<1x1x16x128xf32>
    %297 = vector.shape_cast %296 : vector<1x1x16x128xf32> to vector<1x16x128xf32>
    %298 = vector.shape_cast %295 : vector<1x128xf32> to vector<1x1x128xf32>
    %299 = vector.broadcast %298 : vector<1x1x128xf32> to vector<1x16x128xf32>
    %300 = arith.mulf %297, %299 : vector<1x16x128xf32>
    %301 = arith.addf %294, %300 : vector<1x16x128xf32>
    %302 = vector.extract_strided_slice %8 {offsets = [26, 0], sizes = [1, 128], strides = [1, 1]} : vector<49x128xf32> to vector<1x128xf32>
    %c1_203 = arith.constant 1 : index
    %c0_204 = arith.constant 0 : index
    %c3_205 = arith.constant 3 : index
    %c0_206 = arith.constant 0 : index
    %303 = vector.load %arg8[%c1_203, %c0_204, %c3_205, %c0_206] : memref<2x1x22x128xf32, #tpu.memory_space<vmem>>, vector<1x1x16x128xf32>
    %304 = vector.shape_cast %303 : vector<1x1x16x128xf32> to vector<1x16x128xf32>
    %305 = vector.shape_cast %302 : vector<1x128xf32> to vector<1x1x128xf32>
    %306 = vector.broadcast %305 : vector<1x1x128xf32> to vector<1x16x128xf32>
    %307 = arith.mulf %304, %306 : vector<1x16x128xf32>
    %308 = arith.addf %301, %307 : vector<1x16x128xf32>
    %309 = vector.extract_strided_slice %8 {offsets = [33, 0], sizes = [1, 128], strides = [1, 1]} : vector<49x128xf32> to vector<1x128xf32>
    %c1_207 = arith.constant 1 : index
    %c0_208 = arith.constant 0 : index
    %c4_209 = arith.constant 4 : index
    %c0_210 = arith.constant 0 : index
    %310 = vector.load %arg8[%c1_207, %c0_208, %c4_209, %c0_210] : memref<2x1x22x128xf32, #tpu.memory_space<vmem>>, vector<1x1x16x128xf32>
    %311 = vector.shape_cast %310 : vector<1x1x16x128xf32> to vector<1x16x128xf32>
    %312 = vector.shape_cast %309 : vector<1x128xf32> to vector<1x1x128xf32>
    %313 = vector.broadcast %312 : vector<1x1x128xf32> to vector<1x16x128xf32>
    %314 = arith.mulf %311, %313 : vector<1x16x128xf32>
    %315 = arith.addf %308, %314 : vector<1x16x128xf32>
    %316 = vector.extract_strided_slice %8 {offsets = [40, 0], sizes = [1, 128], strides = [1, 1]} : vector<49x128xf32> to vector<1x128xf32>
    %c1_211 = arith.constant 1 : index
    %c0_212 = arith.constant 0 : index
    %c5_213 = arith.constant 5 : index
    %c0_214 = arith.constant 0 : index
    %317 = vector.load %arg8[%c1_211, %c0_212, %c5_213, %c0_214] : memref<2x1x22x128xf32, #tpu.memory_space<vmem>>, vector<1x1x16x128xf32>
    %318 = vector.shape_cast %317 : vector<1x1x16x128xf32> to vector<1x16x128xf32>
    %319 = vector.shape_cast %316 : vector<1x128xf32> to vector<1x1x128xf32>
    %320 = vector.broadcast %319 : vector<1x1x128xf32> to vector<1x16x128xf32>
    %321 = arith.mulf %318, %320 : vector<1x16x128xf32>
    %322 = arith.addf %315, %321 : vector<1x16x128xf32>
    %323 = vector.extract_strided_slice %8 {offsets = [47, 0], sizes = [1, 128], strides = [1, 1]} : vector<49x128xf32> to vector<1x128xf32>
    %c1_215 = arith.constant 1 : index
    %c0_216 = arith.constant 0 : index
    %c6_217 = arith.constant 6 : index
    %c0_218 = arith.constant 0 : index
    %324 = vector.load %arg8[%c1_215, %c0_216, %c6_217, %c0_218] : memref<2x1x22x128xf32, #tpu.memory_space<vmem>>, vector<1x1x16x128xf32>
    %325 = vector.shape_cast %324 : vector<1x1x16x128xf32> to vector<1x16x128xf32>
    %326 = vector.shape_cast %323 : vector<1x128xf32> to vector<1x1x128xf32>
    %327 = vector.broadcast %326 : vector<1x1x128xf32> to vector<1x16x128xf32>
    %328 = arith.mulf %325, %327 : vector<1x16x128xf32>
    %329 = arith.addf %322, %328 : vector<1x16x128xf32>
    %c0_219 = arith.constant 0 : index
    %c0_220 = arith.constant 0 : index
    %c48 = arith.constant 48 : index
    %330 = vector.load %arg7[%c0_219, %c0_220, %c48] : memref<1x22x176xf32, #tpu.memory_space<vmem>>, vector<1x22x128xf32>
    %c0_221 = arith.constant 0 : index
    %c0_222 = arith.constant 0 : index
    %c0_223 = arith.constant 0 : index
    %c0_224 = arith.constant 0 : index
    %331 = vector.load %arg8[%c0_221, %c0_222, %c0_223, %c0_224] : memref<2x1x22x128xf32, #tpu.memory_space<vmem>>, vector<1x1x22x128xf32>
    %332 = vector.shape_cast %331 : vector<1x1x22x128xf32> to vector<1x22x128xf32>
    %333 = vector.shape_cast %330 : vector<1x22x128xf32> to vector<1x1x22x128xf32>
    tpu.vector_store %arg8[%c0_221, %c0_222, %c0_223, %c0_224], %333 {strides = array<i32>} : memref<2x1x22x128xf32, #tpu.memory_space<vmem>>, vector<1x1x22x128xf32>,
    %334 = vector.extract_strided_slice %8 {offsets = [6, 0], sizes = [1, 128], strides = [1, 1]} : vector<49x128xf32> to vector<1x128xf32>
    %c0_225 = arith.constant 0 : index
    %c0_226 = arith.constant 0 : index
    %c0_227 = arith.constant 0 : index
    %c0_228 = arith.constant 0 : index
    %335 = vector.load %arg8[%c0_225, %c0_226, %c0_227, %c0_228] : memref<2x1x22x128xf32, #tpu.memory_space<vmem>>, vector<1x1x16x128xf32>
    %336 = vector.shape_cast %335 : vector<1x1x16x128xf32> to vector<1x16x128xf32>
    %337 = vector.shape_cast %334 : vector<1x128xf32> to vector<1x1x128xf32>
    %338 = vector.broadcast %337 : vector<1x1x128xf32> to vector<1x16x128xf32>
    %339 = arith.mulf %336, %338 : vector<1x16x128xf32>
    %340 = arith.addf %329, %339 : vector<1x16x128xf32>
    %341 = vector.extract_strided_slice %8 {offsets = [13, 0], sizes = [1, 128], strides = [1, 1]} : vector<49x128xf32> to vector<1x128xf32>
    %c0_229 = arith.constant 0 : index
    %c0_230 = arith.constant 0 : index
    %c1_231 = arith.constant 1 : index
    %c0_232 = arith.constant 0 : index
    %342 = vector.load %arg8[%c0_229, %c0_230, %c1_231, %c0_232] : memref<2x1x22x128xf32, #tpu.memory_space<vmem>>, vector<1x1x16x128xf32>
    %343 = vector.shape_cast %342 : vector<1x1x16x128xf32> to vector<1x16x128xf32>
    %344 = vector.shape_cast %341 : vector<1x128xf32> to vector<1x1x128xf32>
    %345 = vector.broadcast %344 : vector<1x1x128xf32> to vector<1x16x128xf32>
    %346 = arith.mulf %343, %345 : vector<1x16x128xf32>
    %347 = arith.addf %340, %346 : vector<1x16x128xf32>
    %348 = vector.extract_strided_slice %8 {offsets = [20, 0], sizes = [1, 128], strides = [1, 1]} : vector<49x128xf32> to vector<1x128xf32>
    %c0_233 = arith.constant 0 : index
    %c0_234 = arith.constant 0 : index
    %c2_235 = arith.constant 2 : index
    %c0_236 = arith.constant 0 : index
    %349 = vector.load %arg8[%c0_233, %c0_234, %c2_235, %c0_236] : memref<2x1x22x128xf32, #tpu.memory_space<vmem>>, vector<1x1x16x128xf32>
    %350 = vector.shape_cast %349 : vector<1x1x16x128xf32> to vector<1x16x128xf32>
    %351 = vector.shape_cast %348 : vector<1x128xf32> to vector<1x1x128xf32>
    %352 = vector.broadcast %351 : vector<1x1x128xf32> to vector<1x16x128xf32>
    %353 = arith.mulf %350, %352 : vector<1x16x128xf32>
    %354 = arith.addf %347, %353 : vector<1x16x128xf32>
    %355 = vector.extract_strided_slice %8 {offsets = [27, 0], sizes = [1, 128], strides = [1, 1]} : vector<49x128xf32> to vector<1x128xf32>
    %c0_237 = arith.constant 0 : index
    %c0_238 = arith.constant 0 : index
    %c3_239 = arith.constant 3 : index
    %c0_240 = arith.constant 0 : index
    %356 = vector.load %arg8[%c0_237, %c0_238, %c3_239, %c0_240] : memref<2x1x22x128xf32, #tpu.memory_space<vmem>>, vector<1x1x16x128xf32>
    %357 = vector.shape_cast %356 : vector<1x1x16x128xf32> to vector<1x16x128xf32>
    %358 = vector.shape_cast %355 : vector<1x128xf32> to vector<1x1x128xf32>
    %359 = vector.broadcast %358 : vector<1x1x128xf32> to vector<1x16x128xf32>
    %360 = arith.mulf %357, %359 : vector<1x16x128xf32>
    %361 = arith.addf %354, %360 : vector<1x16x128xf32>
    %362 = vector.extract_strided_slice %8 {offsets = [34, 0], sizes = [1, 128], strides = [1, 1]} : vector<49x128xf32> to vector<1x128xf32>
    %c0_241 = arith.constant 0 : index
    %c0_242 = arith.constant 0 : index
    %c4_243 = arith.constant 4 : index
    %c0_244 = arith.constant 0 : index
    %363 = vector.load %arg8[%c0_241, %c0_242, %c4_243, %c0_244] : memref<2x1x22x128xf32, #tpu.memory_space<vmem>>, vector<1x1x16x128xf32>
    %364 = vector.shape_cast %363 : vector<1x1x16x128xf32> to vector<1x16x128xf32>
    %365 = vector.shape_cast %362 : vector<1x128xf32> to vector<1x1x128xf32>
    %366 = vector.broadcast %365 : vector<1x1x128xf32> to vector<1x16x128xf32>
    %367 = arith.mulf %364, %366 : vector<1x16x128xf32>
    %368 = arith.addf %361, %367 : vector<1x16x128xf32>
    %369 = vector.extract_strided_slice %8 {offsets = [41, 0], sizes = [1, 128], strides = [1, 1]} : vector<49x128xf32> to vector<1x128xf32>
    %c0_245 = arith.constant 0 : index
    %c0_246 = arith.constant 0 : index
    %c5_247 = arith.constant 5 : index
    %c0_248 = arith.constant 0 : index
    %370 = vector.load %arg8[%c0_245, %c0_246, %c5_247, %c0_248] : memref<2x1x22x128xf32, #tpu.memory_space<vmem>>, vector<1x1x16x128xf32>
    %371 = vector.shape_cast %370 : vector<1x1x16x128xf32> to vector<1x16x128xf32>
    %372 = vector.shape_cast %369 : vector<1x128xf32> to vector<1x1x128xf32>
    %373 = vector.broadcast %372 : vector<1x1x128xf32> to vector<1x16x128xf32>
    %374 = arith.mulf %371, %373 : vector<1x16x128xf32>
    %375 = arith.addf %368, %374 : vector<1x16x128xf32>
    %376 = vector.extract_strided_slice %8 {offsets = [48, 0], sizes = [1, 128], strides = [1, 1]} : vector<49x128xf32> to vector<1x128xf32>
    %c0_249 = arith.constant 0 : index
    %c0_250 = arith.constant 0 : index
    %c6_251 = arith.constant 6 : index
    %c0_252 = arith.constant 0 : index
    %377 = vector.load %arg8[%c0_249, %c0_250, %c6_251, %c0_252] : memref<2x1x22x128xf32, #tpu.memory_space<vmem>>, vector<1x1x16x128xf32>
    %378 = vector.shape_cast %377 : vector<1x1x16x128xf32> to vector<1x16x128xf32>
    %379 = vector.shape_cast %376 : vector<1x128xf32> to vector<1x1x128xf32>
    %380 = vector.broadcast %379 : vector<1x1x128xf32> to vector<1x16x128xf32>
    %381 = arith.mulf %378, %380 : vector<1x16x128xf32>
    %382 = arith.addf %375, %381 : vector<1x16x128xf32>
    %cst_253 = arith.constant 0.000000e+00 : f32
    %383 = vector.broadcast %cst_253 : f32 to vector<1x16x128xf32>
    %384 = arith.maximumf %382, %383 : vector<1x16x128xf32>
    %385 = vector.shape_cast %384 : vector<1x16x128xf32> to vector<16x128xf32>
    %c0_254 = arith.constant 0 : index
    %c0_255 = arith.constant 0 : index
    %386 = vector.load %arg4[%c0_254, %c0_255] : memref<128x128xf32, #tpu.memory_space<vmem>>, vector<128x128xf32>
    %cst_256 = arith.constant dense<0.000000e+00> : vector<16x128xf32>
    %387 = tpu.matmul %385, %386, %cst_256 {dimension_numbers = #tpu.dot_dimension_numbers<[1], [0], [0], [1], [0, 0, 1, 1], [], []>} : vector<16x128xf32>, vector<128x128xf32>, vector<16x128xf32> -> vector<16x128xf32>
    %c0_257 = arith.constant 0 : index
    %c0_258 = arith.constant 0 : index
    %388 = vector.load %arg5[%c0_257, %c0_258] : memref<1x128xf32, #tpu.memory_space<vmem>>, vector<1x128xf32>
    %389 = vector.broadcast %388 : vector<1x128xf32> to vector<16x128xf32>
    %390 = arith.addf %387, %389 : vector<16x128xf32>
    %391 = arith.negf %390 : vector<16x128xf32>
    %392 = math.exp %391 : vector<16x128xf32>
    %cst_259 = arith.constant 1.000000e+00 : f32
    %393 = vector.broadcast %cst_259 : f32 to vector<16x128xf32>
    %394 = arith.addf %393, %392 : vector<16x128xf32>
    %395 = arith.divf %393, %394 : vector<16x128xf32>
    %396 = vector.shape_cast %395 : vector<16x128xf32> to vector<1x16x128xf32>
    %c0_260 = arith.constant 0 : index
    %c0_261 = arith.constant 0 : index
    %c0_262 = arith.constant 0 : index
    %397 = vector.load %arg1[%c0_260, %c0_261, %c0_262] : memref<1x16x128xf32, #tpu.memory_space<vmem>>, vector<1x16x128xf32>
    %398 = arith.mulf %397, %396 : vector<1x16x128xf32>
    %c0_263 = arith.constant 0 : index
    %c0_264 = arith.constant 0 : index
    %c0_265 = arith.constant 0 : index
    %399 = vector.load %arg6[%c0_263, %c0_264, %c0_265] : memref<1x16x128xf32, #tpu.memory_space<vmem>>, vector<1x16x128xf32>
    tpu.vector_store %arg6[%c0_263, %c0_264, %c0_265], %398 {strides = array<i32>} : memref<1x16x128xf32, #tpu.memory_space<vmem>>, vector<1x16x128xf32>,
    return
  }
  func.func @transform_0(%arg0: i32) -> (i32, i32, i32) {
    %c0_i32 = arith.constant 0 : i32
    %c0_i32_0 = arith.constant 0 : i32
    %c0_i32_1 = arith.constant 0 : i32
    return %arg0, %c0_i32, %c0_i32_0 : i32, i32, i32
  }
  func.func @transform_1(%arg0: i32) -> (i32, i32) {
    %c0_i32 = arith.constant 0 : i32
    %c0_i32_0 = arith.constant 0 : i32
    %c0_i32_1 = arith.constant 0 : i32
    return %c0_i32, %c0_i32_0 : i32, i32
  }
  func.func @transform_2(%arg0: i32) -> (i32, i32) {
    %c0_i32 = arith.constant 0 : i32
    %c0_i32_0 = arith.constant 0 : i32
    %c0_i32_1 = arith.constant 0 : i32
    return %c0_i32, %c0_i32_0 : i32, i32
  }
  func.func @transform_3(%arg0: i32) -> (i32, i32) {
    %c0_i32 = arith.constant 0 : i32
    %c0_i32_0 = arith.constant 0 : i32
    %c0_i32_1 = arith.constant 0 : i32
    return %c0_i32, %c0_i32_0 : i32, i32
  }
  func.func @transform_4(%arg0: i32) -> (i32, i32) {
    %c0_i32 = arith.constant 0 : i32
    %c0_i32_0 = arith.constant 0 : i32
    %c0_i32_1 = arith.constant 0 : i32
    return %c0_i32, %c0_i32_0 : i32, i32
  }
  func.func @transform_5(%arg0: i32) -> (i32, i32, i32) {
    %c0_i32 = arith.constant 0 : i32
    %c0_i32_0 = arith.constant 0 : i32
    %c0_i32_1 = arith.constant 0 : i32
    return %arg0, %c0_i32, %c0_i32_0 : i32, i32, i32
  }
}

</mosaic_0001>

<llo_original>
// kernel: tpu_custom_call.1
$region0: #{tpu_custom_call.1}
  #allocation0 [shape = 'u32[]', space=smem, size = 0x4, offset = 0x4, fixed_abs, tag = 'smem constant byte address 0x4 - core index']
  #allocation1 [shape = 'u32[144,128]{1,0:T(1,128)}', space=vmem, size = 0x12000, scoped, tag = 'internal scratch']
  #allocation2 [shape = 'f32[1,22,176]{2,1,0:T(8,128)}', space=vmem, size = 0x6000, scoped, tag = 'scratch operand']
  #allocation3 [shape = 'f32[2,1,22,128]{3,2,1,0:T(8,128)}', space=vmem, size = 0x6000, scoped, tag = 'scratch operand']
  %s0 = inlined_call_operand.hbm [shape: f32[2,16,128], index: 0, kind: input, shape index: {}]
  %s1 = inlined_call_operand.hbm [shape: f32[49,128], index: 1, kind: input, shape index: {}]
  %s2 = inlined_call_operand.vmem [shape: f32[1,128], index: 2, kind: input, shape index: {}]
  %s3 = inlined_call_operand.hbm [shape: f32[128,128], index: 3, kind: input, shape index: {}]
  %s4 = inlined_call_operand.vmem [shape: f32[1,128], index: 4, kind: input, shape index: {}]
  %s5 = inlined_call_operand.hbm [shape: f32[2,16,128], index: 5, kind: output, shape index: {}]
  %s6 = sld [smem:[#allocation0]]
  $region65: #{tpu_custom_call.1} parent=0
    _
  %s8 = ssub.s32 1, %s6
  %s9 = scalar_select 0, %s8, %s6
  $region1: #{tpu_custom_call.1} parent=0
    #allocation4 [shape = 'u8[16384]{0}', space=vmem, size = 0x4000, scoped, tag = 'input window, operand 0']
    #allocation5 [shape = 's32[2]{0}', space=sflag, size = 0x8, scoped, tag = 'scoped memory for tpu_custom_call.1']
    #allocation6 [shape = 's32[2]{0}', space=sflag, size = 0x8, scoped, tag = 'scoped memory for tpu_custom_call.1']
    #allocation7 [shape = 'u8[28672]{0}', space=vmem, size = 0x7000, scoped, tag = 'input window, operand 1, single buffered']
    #allocation8 [shape = 's32[1]{0}', space=sflag, size = 0x4, scoped, tag = 'scoped memory for tpu_custom_call.1']
    #allocation9 [shape = 'u8[65536]{0}', space=vmem, size = 0x10000, scoped, tag = 'input window, operand 3, single buffered']
    #allocation10 [shape = 'u8[16384]{0}', space=vmem, size = 0x4000, scoped, tag = 'output window, operand 0']
    %10 = vsyncpa [#allocation5], 0
    %s11 = scalar_lea.sflag [#allocation5], 1
    %12 = vsyncpa %s11, 0
    %13 = vsyncpa [#allocation8], 0
    %14 = vsyncpa [#allocation6], 0
    %s15 = scalar_lea.sflag [#allocation6], 1
    %16 = vsyncpa %s15, 0
    loop: start=0, step=1, limit=4
    $region2: #{tpu_custom_call.1} parent=1 // loop_pre_header
      _
    $region3: #{tpu_custom_call.1} parent=1 // loop_header
      %s18 = sphi 0, %s22
      %p19 = scmp.ge.s32.totalorder %s18, 4
      %s28 = sphi 0, %s30
      %s31 = sphi 0, %s28
      %s32 = sphi 0, %s31
      %s48 = sphi 0, %s32
      %s52 = sphi 0, %s52
      %s54 = sphi 0, %s52
      %s55 = sphi 0, %s54
      %s69 = sphi 0, %s55
      %s73 = sphi 0, %s73
      %s75 = sphi 0, %s73
      %s76 = sphi 0, %s75
      %s90 = sphi 0, %s76
      %s94 = sphi 0, %s94
      %s96 = sphi 0, %s94
      %s97 = sphi 0, %s96
      %s111 = sphi 0, %s97
      %s115 = sphi 0, %s115
      %s117 = sphi 0, %s115
      %s118 = sphi 0, %s117
      %s132 = sphi 0, %s118
      %s138 = sphi 0, %s140
      %s141 = sphi 0, %s138
      %s142 = sphi 0, %s141
      %s158 = sphi 0, %s142
    $region4: #{tpu_custom_call.1} parent=1 // loop_header_branch
      %21 = sbr.rel (%p19) target = $region8
    $region5: #{tpu_custom_call.1} parent=1 // loop_body
      %s23 = ssub.s32 %s18, 1
      %s24 = ssub.s32 %s18, 2
      %s25 = sadd.s32 %s18, 1
      %s26 = ssub.s32 %s18, %s25
      %p27 = scmp.eq.s32.totalorder %s26, 0
      %s29 = sadd.s32 %s28, 1
      %s30 = scalar_select %p27, %s28, %s29
      %p33 = pneg %p27
      %p34 = scmp.eq.s32.totalorder %s18, 1
      %p35 = por %p33, %p34
      %p36 = scmp.ne.s32.totalorder %s28, %s31
      %p37 = scmp.eq.s32.totalorder %s18, 0
      %p38 = por %p36, %p37
      %p39 = scmp.ne.s32.totalorder %s28, %s31
      %p40 = scmp.eq.s32.totalorder %s23, 1
      %p41 = por %p39, %p40
      %p42 = scmp.ne.s32.totalorder %s31, %s32
      %p43 = scmp.eq.s32.totalorder %s23, 0
      %p44 = por %p42, %p43
      %p45 = scmp.ne.s32.totalorder %s31, %s32
      %p46 = scmp.eq.s32.totalorder %s24, 1
      %p47 = por %p45, %p46
      %p49 = scmp.ne.s32.totalorder %s32, %s48
      %p50 = scmp.eq.s32.totalorder %s24, 0
      %p51 = por %p49, %p50
      %s53 = sadd.s32 %s52, 1
      %p56 = scmp.eq.s32.totalorder %s18, 1
      %p57 = scmp.ne.s32.totalorder %s52, %s54
      %p58 = scmp.eq.s32.totalorder %s18, 0
      %p59 = por %p57, %p58
      %p60 = scmp.ne.s32.totalorder %s52, %s54
      %p61 = scmp.eq.s32.totalorder %s23, 1
      %p62 = por %p60, %p61
      %p63 = scmp.ne.s32.totalorder %s54, %s55
      %p64 = scmp.eq.s32.totalorder %s23, 0
      %p65 = por %p63, %p64
      %p66 = scmp.ne.s32.totalorder %s54, %s55
      %p67 = scmp.eq.s32.totalorder %s24, 1
      %p68 = por %p66, %p67
      %p70 = scmp.ne.s32.totalorder %s55, %s69
      %p71 = scmp.eq.s32.totalorder %s24, 0
      %p72 = por %p70, %p71
      %s74 = sadd.s32 %s73, 1
      %p77 = scmp.eq.s32.totalorder %s18, 1
      %p78 = scmp.ne.s32.totalorder %s73, %s75
      %p79 = scmp.eq.s32.totalorder %s18, 0
      %p80 = por %p78, %p79
      %p81 = scmp.ne.s32.totalorder %s73, %s75
      %p82 = scmp.eq.s32.totalorder %s23, 1
      %p83 = por %p81, %p82
      %p84 = scmp.ne.s32.totalorder %s75, %s76
      %p85 = scmp.eq.s32.totalorder %s23, 0
      %p86 = por %p84, %p85
      %p87 = scmp.ne.s32.totalorder %s75, %s76
      %p88 = scmp.eq.s32.totalorder %s24, 1
      %p89 = por %p87, %p88
      %p91 = scmp.ne.s32.totalorder %s76, %s90
      %p92 = scmp.eq.s32.totalorder %s24, 0
      %p93 = por %p91, %p92
      %s95 = sadd.s32 %s94, 1
      %p98 = scmp.eq.s32.totalorder %s18, 1
      %p99 = scmp.ne.s32.totalorder %s94, %s96
      %p100 = scmp.eq.s32.totalorder %s18, 0
      %p101 = por %p99, %p100
      %p102 = scmp.ne.s32.totalorder %s94, %s96
      %p103 = scmp.eq.s32.totalorder %s23, 1
      %p104 = por %p102, %p103
      %p105 = scmp.ne.s32.totalorder %s96, %s97
      %p106 = scmp.eq.s32.totalorder %s23, 0
      %p107 = por %p105, %p106
      %p108 = scmp.ne.s32.totalorder %s96, %s97
      %p109 = scmp.eq.s32.totalorder %s24, 1
      %p110 = por %p108, %p109
      %p112 = scmp.ne.s32.totalorder %s97, %s111
      %p113 = scmp.eq.s32.totalorder %s24, 0
      %p114 = por %p112, %p113
      %s116 = sadd.s32 %s115, 1
      %p119 = scmp.eq.s32.totalorder %s18, 1
      %p120 = scmp.ne.s32.totalorder %s115, %s117
      %p121 = scmp.eq.s32.totalorder %s18, 0
      %p122 = por %p120, %p121
      %p123 = scmp.ne.s32.totalorder %s115, %s117
      %p124 = scmp.eq.s32.totalorder %s23, 1
      %p125 = por %p123, %p124
      %p126 = scmp.ne.s32.totalorder %s117, %s118
      %p127 = scmp.eq.s32.totalorder %s23, 0
      %p128 = por %p126, %p127
      %p129 = scmp.ne.s32.totalorder %s117, %s118
      %p130 = scmp.eq.s32.totalorder %s24, 1
      %p131 = por %p129, %p130
      %p133 = scmp.ne.s32.totalorder %s118, %s132
      %p134 = scmp.eq.s32.totalorder %s24, 0
      %p135 = por %p133, %p134
      %s136 = ssub.s32 %s18, %s25
      %p137 = scmp.eq.s32.totalorder %s136, 0
      %s139 = sadd.s32 %s138, 1
      %s140 = scalar_select %p137, %s138, %s139
      %p143 = pneg %p137
      %p144 = scmp.eq.s32.totalorder %s18, 1
      %p145 = por %p143, %p144
      %p146 = scmp.ne.s32.totalorder %s138, %s141
      %p147 = scmp.eq.s32.totalorder %s18, 0
      %p148 = por %p146, %p147
      %p149 = scmp.ne.s32.totalorder %s138, %s141
      %p150 = scmp.eq.s32.totalorder %s23, 1
      %p151 = por %p149, %p150
      %p152 = scmp.ne.s32.totalorder %s141, %s142
      %p153 = scmp.eq.s32.totalorder %s23, 0
      %p154 = por %p152, %p153
      %p155 = scmp.ne.s32.totalorder %s141, %s142
      %p156 = scmp.eq.s32.totalorder %s24, 1
      %p157 = por %p155, %p156
      %p159 = scmp.ne.s32.totalorder %s142, %s158
      %p160 = scmp.eq.s32.totalorder %s24, 0
      %p161 = por %p159, %p160
      %p162 = scmp.le.s32.totalorder 1, %s18
      %p163 = scmp.lt.s32.totalorder %s18, 3
      %p164 = pnand %p162, %p163
      %p165 = pneg %p164
      // Predicated region
      $region9: #{tpu_custom_call.1} parent=5 // pred_check
        _
      $region10: #{tpu_custom_call.1} parent=5 // pred_check_branch
        %167 = sbr.rel (%p164) target = $region12
      $region11: #{tpu_custom_call.1} parent=5 // pred_region
        %s168 = ssub.s32 %s18, 1
        // Predicated region
        $region13: #{tpu_custom_call.1} parent=11 // pred_check
          %p169 = pneg %p65
        $region14: #{tpu_custom_call.1} parent=11 // pred_check_branch
          %171 = sbr.rel (%p169) target = $region16
        $region15: #{tpu_custom_call.1} parent=11 // pred_region
          %s173 = ssub.s32 896, 896
          %174 = vsyncadd [#allocation8], %s173
          %s175 = sshll.u32 [#allocation7], 4
          %s176 = int_to_ptr.vmem [resolvable:$true] %s175
          %181 = dma.hbm_to_vmem [thread:$0]  %s1, 896, %s176, [#allocation8], 128, 128, 8
        $region16: #{tpu_custom_call.1} parent=11 // pred_fallthru
          _
        // Predicated region
        $region17: #{tpu_custom_call.1} parent=11 // pred_check
          %p182 = pneg %p86
        $region18: #{tpu_custom_call.1} parent=11 // pred_check_branch
          %184 = sbr.rel (%p182) target = $region20
        $region19: #{tpu_custom_call.1} parent=11 // pred_region
          _
        $region20: #{tpu_custom_call.1} parent=11 // pred_fallthru
          _
        // Predicated region
        $region21: #{tpu_custom_call.1} parent=11 // pred_check
          %p185 = pneg %p107
        $region22: #{tpu_custom_call.1} parent=11 // pred_check_branch
          %187 = sbr.rel (%p185) target = $region24
        $region23: #{tpu_custom_call.1} parent=11 // pred_region
          %s189 = ssub.s32 2048, 2048
          %190 = vsyncadd [#allocation8], %s189
          %s191 = sshll.u32 [#allocation9], 4
          %s192 = int_to_ptr.vmem [resolvable:$true] %s191
          %197 = dma.hbm_to_vmem [thread:$0]  %s3, 2048, %s192, [#allocation8], 128, 128, 8
        $region24: #{tpu_custom_call.1} parent=11 // pred_fallthru
          _
        // Predicated region
        $region25: #{tpu_custom_call.1} parent=11 // pred_check
          %p198 = pneg %p128
        $region26: #{tpu_custom_call.1} parent=11 // pred_check_branch
          %200 = sbr.rel (%p198) target = $region28
        $region27: #{tpu_custom_call.1} parent=11 // pred_region
          _
        $region28: #{tpu_custom_call.1} parent=11 // pred_fallthru
          _
      $region12: #{tpu_custom_call.1} parent=5 // pred_fallthru
        _
      %p201 = scmp.lt.s32.totalorder %s18, 2
      // Predicated region
      $region29: #{tpu_custom_call.1} parent=5 // pred_check
        %p202 = pneg %p201
      $region30: #{tpu_custom_call.1} parent=5 // pred_check_branch
        %204 = sbr.rel (%p202) target = $region32
      $region31: #{tpu_custom_call.1} parent=5 // pred_region
        // Predicated region
        $region33: #{tpu_custom_call.1} parent=31 // pred_check
          %p205 = pneg %p38
        $region34: #{tpu_custom_call.1} parent=31 // pred_check_branch
          %207 = sbr.rel (%p205) target = $region36
        $region35: #{tpu_custom_call.1} parent=31 // pred_region
          %s208 = sand.u32 %s28, 1
          %s209 = scalar_lea.sflag [#allocation5], %s208
          %s210 = sand.u32 %s28, 1
          %s211 = smul.addr %s210, 16
          %s212 = scalar_lea.vmem [#allocation4], %s211
          %s214 = ssub.s32 256, 256
          %215 = vsyncadd %s209, %s214
          %s216 = smul.addr %s18, 2
          %s217 = smul.addr %s216, 128
          %s218 = scalar_lea.hbm %s0, %s217
          %s219 = sshll.u32 %s212, 4
          %s220 = int_to_ptr.vmem [resolvable:$true] %s219
          %225 = dma.hbm_to_vmem [thread:$0]  %s218, 256, %s220, %s209, 128, 128, 8
        $region36: #{tpu_custom_call.1} parent=31 // pred_fallthru
          _
      $region32: #{tpu_custom_call.1} parent=5 // pred_fallthru
        _
      %p226 = scmp.le.s32.totalorder 1, %s18
      %p227 = scmp.lt.s32.totalorder %s18, 3
      %p228 = pnand %p226, %p227
      %p229 = pneg %p228
      // Predicated region
      $region37: #{tpu_custom_call.1} parent=5 // pred_check
        _
      $region38: #{tpu_custom_call.1} parent=5 // pred_check_branch
        %231 = sbr.rel (%p228) target = $region40
      $region39: #{tpu_custom_call.1} parent=5 // pred_region
        %s232 = ssub.s32 %s18, 1
        %s233 = sand.u32 %s31, 1
        %s234 = scalar_lea.sflag [#allocation5], %s233
        %s235 = sand.u32 %s31, 1
        %s236 = smul.addr %s235, 16
        %s237 = scalar_lea.vmem [#allocation4], %s236
        // Predicated region
        $region41: #{tpu_custom_call.1} parent=39 // pred_check
          %p238 = pneg %p44
        $region42: #{tpu_custom_call.1} parent=39 // pred_check_branch
          %240 = sbr.rel (%p238) target = $region44
        $region43: #{tpu_custom_call.1} parent=39 // pred_region
          %241 = dma.done %s234, 256
        $region44: #{tpu_custom_call.1} parent=39 // pred_fallthru
          _
        // Predicated region
        $region45: #{tpu_custom_call.1} parent=39 // pred_check
          %p242 = pneg %p65
        $region46: #{tpu_custom_call.1} parent=39 // pred_check_branch
          %244 = sbr.rel (%p242) target = $region48
        $region47: #{tpu_custom_call.1} parent=39 // pred_region
          %245 = dma.done [#allocation8], 896
        $region48: #{tpu_custom_call.1} parent=39 // pred_fallthru
          _
        // Predicated region
        $region49: #{tpu_custom_call.1} parent=39 // pred_check
          %p246 = pneg %p107
        $region50: #{tpu_custom_call.1} parent=39 // pred_check_branch
          %248 = sbr.rel (%p246) target = $region52
        $region51: #{tpu_custom_call.1} parent=39 // pred_region
          %249 = dma.done [#allocation8], 2048
        $region52: #{tpu_custom_call.1} parent=39 // pred_fallthru
          _
        %s250 = sand.u32 %s31, 1
        %s251 = scalar_lea.sflag [#allocation5], %s250
        %s252 = sand.u32 %s31, 1
        %s253 = smul.addr %s252, 16
        %s254 = scalar_lea.vmem [#allocation4], %s253
        %p255 = pneg %p44
        %p256 = pneg %p41
        %p257 = pneg %p65
        %p258 = pneg %p62
        %p259 = pneg %p86
        %p260 = pneg %p83
        %p261 = pneg %p107
        %p262 = pneg %p104
        %p263 = pneg %p128
        %p264 = pneg %p125
        %p265 = pneg %p154
        %p266 = pneg %p151
        %s267 = sand.u32 %s141, 1
        %s268 = scalar_lea.sflag [#allocation6], %s267
        %s269 = sand.u32 %s141, 1
        %s270 = smul.addr %s269, 16
        %s271 = scalar_lea.vmem [#allocation10], %s270
        %272 = vst [vmem:[#allocation2] sm:$0x7] 0.0
        %vm273 = vcmask 387072
        %274 = vst.msk [vmem:[#allocation2 + $0x8] sm:$0x7] %vm273, 0.0
        %275 = vst [vmem:[#allocation2 + $0x20] sm:$0x38] 0.0
        %vm276 = vcmask 390147
        %277 = vst.msk [vmem:[#allocation2 + $0x28] sm:$0x38] %vm276, 0.0
        %vm278 = vcmask 195587
        %279 = vst.msk [vmem:[#allocation2] sm:$0xf8] %vm278, 0.0
        %vm280 = vcmask 195584
        %281 = vst.msk [vmem:[#allocation2 + $0x10] sm:$0xff] %vm280, 0.0
        %vm282 = vcmask 190464
        %283 = vst.msk [vmem:[#allocation2 + $0x20] sm:$0x7] %vm282, 0.0
        %vm284 = vcmask 392387
        %285 = vst.msk [vmem:[#allocation2 + $0x8] sm:$0xf8] %vm284, 0.0
        %vm286 = vcmask 392384
        %287 = vst.msk [vmem:[#allocation2 + $0x18] sm:$0xff] %vm286, 0.0
        %vm288 = vcmask 387264
        %289 = vst.msk [vmem:[#allocation2 + $0x28] sm:$0x7] %vm288, 0.0
        %v290 = vld [vmem:[%s237] sm:$0xff]
        %v291 = vld [vmem:[%s237 + $0x8] sm:$0xff]
        %vm294 = vcmask 1042432
        %v295 = vrot.slane %v290, 5
        %v296 = vrot.slane %v291, 5
        %v297 = vsel %vm294, %v295, %v296
        %298 = vrot.lane.b32.xlu0 %v295, 24
        %v299 = vpop.permute.xlu0 %298
        %300 = vrot.lane.b32.xlu0 %v297, 24
        %v301 = vpop.permute.xlu0 %300
        %302 = vrot.lane.b32.xlu0 %v296, 24
        %v303 = vpop.permute.xlu0 %302
        %vm307 = vcmask 1047747
        %308 = vst.msk [vmem:[#allocation2] sm:$0xf8] %vm307, %v299
        %309 = vst.msk [vmem:[#allocation2 + $0x8] sm:$0xf8] %vm278, %v299
        %vm310 = vcmask 1047744
        %311 = vst.msk [vmem:[#allocation2 + $0x10] sm:$0xff] %vm310, %v301
        %312 = vst.msk [vmem:[#allocation2 + $0x18] sm:$0xff] %vm280, %v301
        %vm313 = vcmask 1042624
        %314 = vst.msk [vmem:[#allocation2 + $0x20] sm:$0x7] %vm313, %v303
        %315 = vst.msk [vmem:[#allocation2 + $0x28] sm:$0x7] %vm282, %v303
        %v316 = vld [vmem:[#allocation7] sm:$0xff]
        %v317 = vld [vmem:[#allocation7 + $0x8] sm:$0xff]
        %v318 = vld [vmem:[#allocation7 + $0x10] sm:$0xff]
        %v319 = vld [vmem:[#allocation7 + $0x18] sm:$0xff]
        %v320 = vld [vmem:[#allocation7 + $0x20] sm:$0xff]
        %v321 = vld [vmem:[#allocation7 + $0x28] sm:$0xff]
        %v322 = vld [vmem:[#allocation7 + $0x30] sm:$0x1]
        %v323 = vld [vmem:[%s2] sm:$0x1]
        %v325 = vlaneseq
        %v326 = vshrl.u32 %v325, 7
        %v327 = vsub.s32 0, %v326
        %v328 = vrot.slane %v323, %v327
        %v330 = vld [vmem:[#allocation2] sm:$0xff]
        %v331 = vld [vmem:[#allocation2 + $0x10] sm:$0xff]
        %v332 = vld [vmem:[#allocation2 + $0x20] sm:$0x3f]
        %333 = vst [vmem:[#allocation3] sm:$0xff] %v330
        %334 = vst [vmem:[#allocation3 + $0x8] sm:$0xff] %v331
        %335 = vst [vmem:[#allocation3 + $0x10] sm:$0x3f] %v332
        %v336 = vld [vmem:[#allocation3] sm:$0xff]
        %v337 = vld [vmem:[#allocation3 + $0x8] sm:$0xff]
        %v338 = vlaneseq
        %v339 = vshrl.u32 %v338, 7
        %v340 = vsub.s32 0, %v339
        %v341 = vrot.slane %v316, %v340
        %v342 = vmul.f32 %v336, %v341
        %v343 = vmul.f32 %v337, %v341
        %v344 = vadd.f32 %v328, %v342
        %v345 = vadd.f32 %v328, %v343
        %v346 = vld [vmem:[#allocation3 + $0x1] sm:$0xff]
        %v347 = vld [vmem:[#allocation3 + $0x9] sm:$0xff]
        %v348 = vlaneseq
        %v349 = vshrl.u32 %v348, 7
        %v350 = vsub.s32 7, %v349
        %v351 = vrot.slane %v316, %v350
        %v352 = vmul.f32 %v346, %v351
        %v353 = vmul.f32 %v347, %v351
        %v354 = vadd.f32 %v344, %v352
        %v355 = vadd.f32 %v345, %v353
        %v356 = vld [vmem:[#allocation3 + $0x2] sm:$0xff]
        %v357 = vld [vmem:[#allocation3 + $0xa] sm:$0xff]
        %v358 = vlaneseq
        %v359 = vshrl.u32 %v358, 7
        %v360 = vsub.s32 6, %v359
        %v361 = vrot.slane %v317, %v360
        %v362 = vmul.f32 %v356, %v361
        %v363 = vmul.f32 %v357, %v361
        %v364 = vadd.f32 %v354, %v362
        %v365 = vadd.f32 %v355, %v363
        %v366 = vld [vmem:[#allocation3 + $0x3] sm:$0xff]
        %v367 = vld [vmem:[#allocation3 + $0xb] sm:$0xff]
        %v368 = vlaneseq
        %v369 = vshrl.u32 %v368, 7
        %v370 = vsub.s32 5, %v369
        %v371 = vrot.slane %v318, %v370
        %v372 = vmul.f32 %v366, %v371
        %v373 = vmul.f32 %v367, %v371
        %v374 = vadd.f32 %v364, %v372
        %v375 = vadd.f32 %v365, %v373
        %v376 = vld [vmem:[#allocation3 + $0x4] sm:$0xff]
        %v377 = vld [vmem:[#allocation3 + $0xc] sm:$0xff]
        %v378 = vlaneseq
        %v379 = vshrl.u32 %v378, 7
        %v380 = vsub.s32 4, %v379
        %v381 = vrot.slane %v319, %v380
        %v382 = vmul.f32 %v376, %v381
        %v383 = vmul.f32 %v377, %v381
        %v384 = vadd.f32 %v374, %v382
        %v385 = vadd.f32 %v375, %v383
        %v386 = vld [vmem:[#allocation3 + $0x5] sm:$0xff]
        %v387 = vld [vmem:[#allocation3 + $0xd] sm:$0xff]
        %v388 = vlaneseq
        %v389 = vshrl.u32 %v388, 7
        %v390 = vsub.s32 3, %v389
        %v391 = vrot.slane %v320, %v390
        %v392 = vmul.f32 %v386, %v391
        %v393 = vmul.f32 %v387, %v391
        %v394 = vadd.f32 %v384, %v392
        %v395 = vadd.f32 %v385, %v393
        %v396 = vld [vmem:[#allocation3 + $0x6] sm:$0xff]
        %v397 = vld [vmem:[#allocation3 + $0xe] sm:$0xff]
        %v398 = vlaneseq
        %v399 = vshrl.u32 %v398, 7
        %v400 = vsub.s32 2, %v399
        %v401 = vrot.slane %v321, %v400
        %v402 = vmul.f32 %v396, %v401
        %v403 = vmul.f32 %v397, %v401
        %v404 = vadd.f32 %v394, %v402
        %v405 = vadd.f32 %v395, %v403
        %v406 = vld [vmem:[#allocation2] sm:$0xff]
        %v407 = vld [vmem:[#allocation2 + $0x8] sm:$0xff]
        %v408 = vld [vmem:[#allocation2 + $0x10] sm:$0xff]
        %v409 = vld [vmem:[#allocation2 + $0x18] sm:$0xff]
        %v410 = vld [vmem:[#allocation2 + $0x20] sm:$0x3f]
        %v411 = vld [vmem:[#allocation2 + $0x28] sm:$0x3f]
        %418 = vrot.lane.b32.xlu0 %v406, 120
        %v419 = vpop.permute.xlu0 %418
        %420 = vrot.lane.b32.xlu0 %v407, 120
        %v421 = vpop.permute.xlu0 %420
        %422 = vrot.lane.b32.xlu0 %v408, 120
        %v423 = vpop.permute.xlu0 %422
        %424 = vrot.lane.b32.xlu0 %v409, 120
        %v425 = vpop.permute.xlu0 %424
        %426 = vrot.lane.b32.xlu0 %v410, 120
        %v427 = vpop.permute.xlu0 %426
        %428 = vrot.lane.b32.xlu0 %v411, 120
        %v429 = vpop.permute.xlu0 %428
        %vm430 = vcmask 982016
        %v431 = vsel %vm430, %v419, %v421
        %v432 = vsel %vm430, %v423, %v425
        %v433 = vsel %vm430, %v427, %v429
        %s437 = scalar_lea.vmem [#allocation3], 24
        %438 = vst [vmem:[%s437] sm:$0xff] %v431
        %439 = vst [vmem:[%s437 + $0x8] sm:$0xff] %v432
        %440 = vst [vmem:[%s437 + $0x10] sm:$0x3f] %v433
        %v441 = vld [vmem:[%s437] sm:$0xff]
        %v442 = vld [vmem:[%s437 + $0x8] sm:$0xff]
        %v443 = vlaneseq
        %v444 = vshrl.u32 %v443, 7
        %v445 = vsub.s32 1, %v444
        %v446 = vrot.slane %v316, %v445
        %v447 = vmul.f32 %v441, %v446
        %v448 = vmul.f32 %v442, %v446
        %v449 = vadd.f32 %v404, %v447
        %v450 = vadd.f32 %v405, %v448
        %v451 = vld [vmem:[%s437 + $0x1] sm:$0xff]
        %v452 = vld [vmem:[%s437 + $0x9] sm:$0xff]
        %v453 = vlaneseq
        %v454 = vshrl.u32 %v453, 7
        %v455 = vsub.s32 0, %v454
        %v456 = vrot.slane %v317, %v455
        %v457 = vmul.f32 %v451, %v456
        %v458 = vmul.f32 %v452, %v456
        %v459 = vadd.f32 %v449, %v457
        %v460 = vadd.f32 %v450, %v458
        %v461 = vld [vmem:[%s437 + $0x2] sm:$0xff]
        %v462 = vld [vmem:[%s437 + $0xa] sm:$0xff]
        %v463 = vlaneseq
        %v464 = vshrl.u32 %v463, 7
        %v465 = vsub.s32 7, %v464
        %v466 = vrot.slane %v317, %v465
        %v467 = vmul.f32 %v461, %v466
        %v468 = vmul.f32 %v462, %v466
        %v469 = vadd.f32 %v459, %v467
        %v470 = vadd.f32 %v460, %v468
        %v471 = vld [vmem:[%s437 + $0x3] sm:$0xff]
        %v472 = vld [vmem:[%s437 + $0xb] sm:$0xff]
        %v473 = vlaneseq
        %v474 = vshrl.u32 %v473, 7
        %v475 = vsub.s32 6, %v474
        %v476 = vrot.slane %v318, %v475
        %v477 = vmul.f32 %v471, %v476
        %v478 = vmul.f32 %v472, %v476
        %v479 = vadd.f32 %v469, %v477
        %v480 = vadd.f32 %v470, %v478
        %v481 = vld [vmem:[%s437 + $0x4] sm:$0xff]
        %v482 = vld [vmem:[%s437 + $0xc] sm:$0xff]
        %v483 = vlaneseq
        %v484 = vshrl.u32 %v483, 7
        %v485 = vsub.s32 5, %v484
        %v486 = vrot.slane %v319, %v485
        %v487 = vmul.f32 %v481, %v486
        %v488 = vmul.f32 %v482, %v486
        %v489 = vadd.f32 %v479, %v487
        %v490 = vadd.f32 %v480, %v488
        %v491 = vld [vmem:[%s437 + $0x5] sm:$0xff]
        %v492 = vld [vmem:[%s437 + $0xd] sm:$0xff]
        %v493 = vlaneseq
        %v494 = vshrl.u32 %v493, 7
        %v495 = vsub.s32 4, %v494
        %v496 = vrot.slane %v320, %v495
        %v497 = vmul.f32 %v491, %v496
        %v498 = vmul.f32 %v492, %v496
        %v499 = vadd.f32 %v489, %v497
        %v500 = vadd.f32 %v490, %v498
        %v501 = vld [vmem:[%s437 + $0x6] sm:$0xff]
        %v502 = vld [vmem:[%s437 + $0xe] sm:$0xff]
        %v503 = vlaneseq
        %v504 = vshrl.u32 %v503, 7
        %v505 = vsub.s32 3, %v504
        %v506 = vrot.slane %v321, %v505
        %v507 = vmul.f32 %v501, %v506
        %v508 = vmul.f32 %v502, %v506
        %v509 = vadd.f32 %v499, %v507
        %v510 = vadd.f32 %v500, %v508
        %v511 = vld [vmem:[#allocation2] sm:$0xff]
        %v512 = vld [vmem:[#allocation2 + $0x8] sm:$0xff]
        %v513 = vld [vmem:[#allocation2 + $0x10] sm:$0xff]
        %v514 = vld [vmem:[#allocation2 + $0x18] sm:$0xff]
        %v515 = vld [vmem:[#allocation2 + $0x20] sm:$0x3f]
        %v516 = vld [vmem:[#allocation2 + $0x28] sm:$0x3f]
        %523 = vrot.lane.b32.xlu0 %v511, 112
        %v524 = vpop.permute.xlu0 %523
        %525 = vrot.lane.b32.xlu0 %v512, 112
        %v526 = vpop.permute.xlu0 %525
        %527 = vrot.lane.b32.xlu0 %v513, 112
        %v528 = vpop.permute.xlu0 %527
        %529 = vrot.lane.b32.xlu0 %v514, 112
        %v530 = vpop.permute.xlu0 %529
        %531 = vrot.lane.b32.xlu0 %v515, 112
        %v532 = vpop.permute.xlu0 %531
        %533 = vrot.lane.b32.xlu0 %v516, 112
        %v534 = vpop.permute.xlu0 %533
        %vm535 = vcmask 916480
        %v536 = vsel %vm535, %v524, %v526
        %v537 = vsel %vm535, %v528, %v530
        %v538 = vsel %vm535, %v532, %v534
        %542 = vst [vmem:[#allocation3] sm:$0xff] %v536
        %543 = vst [vmem:[#allocation3 + $0x8] sm:$0xff] %v537
        %544 = vst [vmem:[#allocation3 + $0x10] sm:$0x3f] %v538
        %v545 = vld [vmem:[#allocation3] sm:$0xff]
        %v546 = vld [vmem:[#allocation3 + $0x8] sm:$0xff]
        %v547 = vlaneseq
        %v548 = vshrl.u32 %v547, 7
        %v549 = vsub.s32 2, %v548
        %v550 = vrot.slane %v316, %v549
        %v551 = vmul.f32 %v545, %v550
        %v552 = vmul.f32 %v546, %v550
        %v553 = vadd.f32 %v509, %v551
        %v554 = vadd.f32 %v510, %v552
        %v555 = vld [vmem:[#allocation3 + $0x1] sm:$0xff]
        %v556 = vld [vmem:[#allocation3 + $0x9] sm:$0xff]
        %v557 = vlaneseq
        %v558 = vshrl.u32 %v557, 7
        %v559 = vsub.s32 1, %v558
        %v560 = vrot.slane %v317, %v559
        %v561 = vmul.f32 %v555, %v560
        %v562 = vmul.f32 %v556, %v560
        %v563 = vadd.f32 %v553, %v561
        %v564 = vadd.f32 %v554, %v562
        %v565 = vld [vmem:[#allocation3 + $0x2] sm:$0xff]
        %v566 = vld [vmem:[#allocation3 + $0xa] sm:$0xff]
        %v567 = vlaneseq
        %v568 = vshrl.u32 %v567, 7
        %v569 = vsub.s32 0, %v568
        %v570 = vrot.slane %v318, %v569
        %v571 = vmul.f32 %v565, %v570
        %v572 = vmul.f32 %v566, %v570
        %v573 = vadd.f32 %v563, %v571
        %v574 = vadd.f32 %v564, %v572
        %v575 = vld [vmem:[#allocation3 + $0x3] sm:$0xff]
        %v576 = vld [vmem:[#allocation3 + $0xb] sm:$0xff]
        %v577 = vlaneseq
        %v578 = vshrl.u32 %v577, 7
        %v579 = vsub.s32 7, %v578
        %v580 = vrot.slane %v318, %v579
        %v581 = vmul.f32 %v575, %v580
        %v582 = vmul.f32 %v576, %v580
        %v583 = vadd.f32 %v573, %v581
        %v584 = vadd.f32 %v574, %v582
        %v585 = vld [vmem:[#allocation3 + $0x4] sm:$0xff]
        %v586 = vld [vmem:[#allocation3 + $0xc] sm:$0xff]
        %v587 = vlaneseq
        %v588 = vshrl.u32 %v587, 7
        %v589 = vsub.s32 6, %v588
        %v590 = vrot.slane %v319, %v589
        %v591 = vmul.f32 %v585, %v590
        %v592 = vmul.f32 %v586, %v590
        %v593 = vadd.f32 %v583, %v591
        %v594 = vadd.f32 %v584, %v592
        %v595 = vld [vmem:[#allocation3 + $0x5] sm:$0xff]
        %v596 = vld [vmem:[#allocation3 + $0xd] sm:$0xff]
        %v597 = vlaneseq
        %v598 = vshrl.u32 %v597, 7
        %v599 = vsub.s32 5, %v598
        %v600 = vrot.slane %v320, %v599
        %v601 = vmul.f32 %v595, %v600
        %v602 = vmul.f32 %v596, %v600
        %v603 = vadd.f32 %v593, %v601
        %v604 = vadd.f32 %v594, %v602
        %v605 = vld [vmem:[#allocation3 + $0x6] sm:$0xff]
        %v606 = vld [vmem:[#allocation3 + $0xe] sm:$0xff]
        %v607 = vlaneseq
        %v608 = vshrl.u32 %v607, 7
        %v609 = vsub.s32 4, %v608
        %v610 = vrot.slane %v321, %v609
        %v611 = vmul.f32 %v605, %v610
        %v612 = vmul.f32 %v606, %v610
        %v613 = vadd.f32 %v603, %v611
        %v614 = vadd.f32 %v604, %v612
        %v615 = vld [vmem:[#allocation2] sm:$0xff]
        %v616 = vld [vmem:[#allocation2 + $0x8] sm:$0xff]
        %v617 = vld [vmem:[#allocation2 + $0x10] sm:$0xff]
        %v618 = vld [vmem:[#allocation2 + $0x18] sm:$0xff]
        %v619 = vld [vmem:[#allocation2 + $0x20] sm:$0x3f]
        %v620 = vld [vmem:[#allocation2 + $0x28] sm:$0x3f]
        %627 = vrot.lane.b32.xlu0 %v615, 104
        %v628 = vpop.permute.xlu0 %627
        %629 = vrot.lane.b32.xlu0 %v616, 104
        %v630 = vpop.permute.xlu0 %629
        %631 = vrot.lane.b32.xlu0 %v617, 104
        %v632 = vpop.permute.xlu0 %631
        %633 = vrot.lane.b32.xlu0 %v618, 104
        %v634 = vpop.permute.xlu0 %633
        %635 = vrot.lane.b32.xlu0 %v619, 104
        %v636 = vpop.permute.xlu0 %635
        %637 = vrot.lane.b32.xlu0 %v620, 104
        %v638 = vpop.permute.xlu0 %637
        %vm639 = vcmask 850944
        %v640 = vsel %vm639, %v628, %v630
        %v641 = vsel %vm639, %v632, %v634
        %v642 = vsel %vm639, %v636, %v638
        %646 = vst [vmem:[%s437] sm:$0xff] %v640
        %647 = vst [vmem:[%s437 + $0x8] sm:$0xff] %v641
        %648 = vst [vmem:[%s437 + $0x10] sm:$0x3f] %v642
        %v649 = vld [vmem:[%s437] sm:$0xff]
        %v650 = vld [vmem:[%s437 + $0x8] sm:$0xff]
        %v651 = vlaneseq
        %v652 = vshrl.u32 %v651, 7
        %v653 = vsub.s32 3, %v652
        %v654 = vrot.slane %v316, %v653
        %v655 = vmul.f32 %v649, %v654
        %v656 = vmul.f32 %v650, %v654
        %v657 = vadd.f32 %v613, %v655
        %v658 = vadd.f32 %v614, %v656
        %v659 = vld [vmem:[%s437 + $0x1] sm:$0xff]
        %v660 = vld [vmem:[%s437 + $0x9] sm:$0xff]
        %v661 = vlaneseq
        %v662 = vshrl.u32 %v661, 7
        %v663 = vsub.s32 2, %v662
        %v664 = vrot.slane %v317, %v663
        %v665 = vmul.f32 %v659, %v664
        %v666 = vmul.f32 %v660, %v664
        %v667 = vadd.f32 %v657, %v665
        %v668 = vadd.f32 %v658, %v666
        %v669 = vld [vmem:[%s437 + $0x2] sm:$0xff]
        %v670 = vld [vmem:[%s437 + $0xa] sm:$0xff]
        %v671 = vlaneseq
        %v672 = vshrl.u32 %v671, 7
        %v673 = vsub.s32 1, %v672
        %v674 = vrot.slane %v318, %v673
        %v675 = vmul.f32 %v669, %v674
        %v676 = vmul.f32 %v670, %v674
        %v677 = vadd.f32 %v667, %v675
        %v678 = vadd.f32 %v668, %v676
        %v679 = vld [vmem:[%s437 + $0x3] sm:$0xff]
        %v680 = vld [vmem:[%s437 + $0xb] sm:$0xff]
        %v681 = vlaneseq
        %v682 = vshrl.u32 %v681, 7
        %v683 = vsub.s32 0, %v682
        %v684 = vrot.slane %v319, %v683
        %v685 = vmul.f32 %v679, %v684
        %v686 = vmul.f32 %v680, %v684
        %v687 = vadd.f32 %v677, %v685
        %v688 = vadd.f32 %v678, %v686
        %v689 = vld [vmem:[%s437 + $0x4] sm:$0xff]
        %v690 = vld [vmem:[%s437 + $0xc] sm:$0xff]
        %v691 = vlaneseq
        %v692 = vshrl.u32 %v691, 7
        %v693 = vsub.s32 7, %v692
        %v694 = vrot.slane %v319, %v693
        %v695 = vmul.f32 %v689, %v694
        %v696 = vmul.f32 %v690, %v694
        %v697 = vadd.f32 %v687, %v695
        %v698 = vadd.f32 %v688, %v696
        %v699 = vld [vmem:[%s437 + $0x5] sm:$0xff]
        %v700 = vld [vmem:[%s437 + $0xd] sm:$0xff]
        %v701 = vlaneseq
        %v702 = vshrl.u32 %v701, 7
        %v703 = vsub.s32 6, %v702
        %v704 = vrot.slane %v320, %v703
        %v705 = vmul.f32 %v699, %v704
        %v706 = vmul.f32 %v700, %v704
        %v707 = vadd.f32 %v697, %v705
        %v708 = vadd.f32 %v698, %v706
        %v709 = vld [vmem:[%s437 + $0x6] sm:$0xff]
        %v710 = vld [vmem:[%s437 + $0xe] sm:$0xff]
        %v711 = vlaneseq
        %v712 = vshrl.u32 %v711, 7
        %v713 = vsub.s32 5, %v712
        %v714 = vrot.slane %v321, %v713
        %v715 = vmul.f32 %v709, %v714
        %v716 = vmul.f32 %v710, %v714
        %v717 = vadd.f32 %v707, %v715
        %v718 = vadd.f32 %v708, %v716
        %v719 = vld [vmem:[#allocation2] sm:$0xff]
        %v720 = vld [vmem:[#allocation2 + $0x8] sm:$0xff]
        %v721 = vld [vmem:[#allocation2 + $0x10] sm:$0xff]
        %v722 = vld [vmem:[#allocation2 + $0x18] sm:$0xff]
        %v723 = vld [vmem:[#allocation2 + $0x20] sm:$0x3f]
        %v724 = vld [vmem:[#allocation2 + $0x28] sm:$0x3f]
        %731 = vrot.lane.b32.xlu0 %v719, 96
        %v732 = vpop.permute.xlu0 %731
        %733 = vrot.lane.b32.xlu0 %v720, 96
        %v734 = vpop.permute.xlu0 %733
        %735 = vrot.lane.b32.xlu0 %v721, 96
        %v736 = vpop.permute.xlu0 %735
        %737 = vrot.lane.b32.xlu0 %v722, 96
        %v738 = vpop.permute.xlu0 %737
        %739 = vrot.lane.b32.xlu0 %v723, 96
        %v740 = vpop.permute.xlu0 %739
        %741 = vrot.lane.b32.xlu0 %v724, 96
        %v742 = vpop.permute.xlu0 %741
        %vm743 = vcmask 785408
        %v744 = vsel %vm743, %v732, %v734
        %v745 = vsel %vm743, %v736, %v738
        %v746 = vsel %vm743, %v740, %v742
        %750 = vst [vmem:[#allocation3] sm:$0xff] %v744
        %751 = vst [vmem:[#allocation3 + $0x8] sm:$0xff] %v745
        %752 = vst [vmem:[#allocation3 + $0x10] sm:$0x3f] %v746
        %v753 = vld [vmem:[#allocation3] sm:$0xff]
        %v754 = vld [vmem:[#allocation3 + $0x8] sm:$0xff]
        %v755 = vlaneseq
        %v756 = vshrl.u32 %v755, 7
        %v757 = vsub.s32 4, %v756
        %v758 = vrot.slane %v316, %v757
        %v759 = vmul.f32 %v753, %v758
        %v760 = vmul.f32 %v754, %v758
        %v761 = vadd.f32 %v717, %v759
        %v762 = vadd.f32 %v718, %v760
        %v763 = vld [vmem:[#allocation3 + $0x1] sm:$0xff]
        %v764 = vld [vmem:[#allocation3 + $0x9] sm:$0xff]
        %v765 = vlaneseq
        %v766 = vshrl.u32 %v765, 7
        %v767 = vsub.s32 3, %v766
        %v768 = vrot.slane %v317, %v767
        %v769 = vmul.f32 %v763, %v768
        %v770 = vmul.f32 %v764, %v768
        %v771 = vadd.f32 %v761, %v769
        %v772 = vadd.f32 %v762, %v770
        %v773 = vld [vmem:[#allocation3 + $0x2] sm:$0xff]
        %v774 = vld [vmem:[#allocation3 + $0xa] sm:$0xff]
        %v775 = vlaneseq
        %v776 = vshrl.u32 %v775, 7
        %v777 = vsub.s32 2, %v776
        %v778 = vrot.slane %v318, %v777
        %v779 = vmul.f32 %v773, %v778
        %v780 = vmul.f32 %v774, %v778
        %v781 = vadd.f32 %v771, %v779
        %v782 = vadd.f32 %v772, %v780
        %v783 = vld [vmem:[#allocation3 + $0x3] sm:$0xff]
        %v784 = vld [vmem:[#allocation3 + $0xb] sm:$0xff]
        %v785 = vlaneseq
        %v786 = vshrl.u32 %v785, 7
        %v787 = vsub.s32 1, %v786
        %v788 = vrot.slane %v319, %v787
        %v789 = vmul.f32 %v783, %v788
        %v790 = vmul.f32 %v784, %v788
        %v791 = vadd.f32 %v781, %v789
        %v792 = vadd.f32 %v782, %v790
        %v793 = vld [vmem:[#allocation3 + $0x4] sm:$0xff]
        %v794 = vld [vmem:[#allocation3 + $0xc] sm:$0xff]
        %v795 = vlaneseq
        %v796 = vshrl.u32 %v795, 7
        %v797 = vsub.s32 0, %v796
        %v798 = vrot.slane %v320, %v797
        %v799 = vmul.f32 %v793, %v798
        %v800 = vmul.f32 %v794, %v798
        %v801 = vadd.f32 %v791, %v799
        %v802 = vadd.f32 %v792, %v800
        %v803 = vld [vmem:[#allocation3 + $0x5] sm:$0xff]
        %v804 = vld [vmem:[#allocation3 + $0xd] sm:$0xff]
        %v805 = vlaneseq
        %v806 = vshrl.u32 %v805, 7
        %v807 = vsub.s32 7, %v806
        %v808 = vrot.slane %v320, %v807
        %v809 = vmul.f32 %v803, %v808
        %v810 = vmul.f32 %v804, %v808
        %v811 = vadd.f32 %v801, %v809
        %v812 = vadd.f32 %v802, %v810
        %v813 = vld [vmem:[#allocation3 + $0x6] sm:$0xff]
        %v814 = vld [vmem:[#allocation3 + $0xe] sm:$0xff]
        %v815 = vlaneseq
        %v816 = vshrl.u32 %v815, 7
        %v817 = vsub.s32 6, %v816
        %v818 = vrot.slane %v321, %v817
        %v819 = vmul.f32 %v813, %v818
        %v820 = vmul.f32 %v814, %v818
        %v821 = vadd.f32 %v811, %v819
        %v822 = vadd.f32 %v812, %v820
        %v823 = vld [vmem:[#allocation2] sm:$0xff]
        %v824 = vld [vmem:[#allocation2 + $0x8] sm:$0xff]
        %v825 = vld [vmem:[#allocation2 + $0x10] sm:$0xff]
        %v826 = vld [vmem:[#allocation2 + $0x18] sm:$0xff]
        %v827 = vld [vmem:[#allocation2 + $0x20] sm:$0x3f]
        %v828 = vld [vmem:[#allocation2 + $0x28] sm:$0x3f]
        %835 = vrot.lane.b32.xlu0 %v823, 88
        %v836 = vpop.permute.xlu0 %835
        %837 = vrot.lane.b32.xlu0 %v824, 88
        %v838 = vpop.permute.xlu0 %837
        %839 = vrot.lane.b32.xlu0 %v825, 88
        %v840 = vpop.permute.xlu0 %839
        %841 = vrot.lane.b32.xlu0 %v826, 88
        %v842 = vpop.permute.xlu0 %841
        %843 = vrot.lane.b32.xlu0 %v827, 88
        %v844 = vpop.permute.xlu0 %843
        %845 = vrot.lane.b32.xlu0 %v828, 88
        %v846 = vpop.permute.xlu0 %845
        %vm847 = vcmask 719872
        %v848 = vsel %vm847, %v836, %v838
        %v849 = vsel %vm847, %v840, %v842
        %v850 = vsel %vm847, %v844, %v846
        %854 = vst [vmem:[%s437] sm:$0xff] %v848
        %855 = vst [vmem:[%s437 + $0x8] sm:$0xff] %v849
        %856 = vst [vmem:[%s437 + $0x10] sm:$0x3f] %v850
        %v857 = vld [vmem:[%s437] sm:$0xff]
        %v858 = vld [vmem:[%s437 + $0x8] sm:$0xff]
        %v859 = vlaneseq
        %v860 = vshrl.u32 %v859, 7
        %v861 = vsub.s32 5, %v860
        %v862 = vrot.slane %v316, %v861
        %v863 = vmul.f32 %v857, %v862
        %v864 = vmul.f32 %v858, %v862
        %v865 = vadd.f32 %v821, %v863
        %v866 = vadd.f32 %v822, %v864
        %v867 = vld [vmem:[%s437 + $0x1] sm:$0xff]
        %v868 = vld [vmem:[%s437 + $0x9] sm:$0xff]
        %v869 = vlaneseq
        %v870 = vshrl.u32 %v869, 7
        %v871 = vsub.s32 4, %v870
        %v872 = vrot.slane %v317, %v871
        %v873 = vmul.f32 %v867, %v872
        %v874 = vmul.f32 %v868, %v872
        %v875 = vadd.f32 %v865, %v873
        %v876 = vadd.f32 %v866, %v874
        %v877 = vld [vmem:[%s437 + $0x2] sm:$0xff]
        %v878 = vld [vmem:[%s437 + $0xa] sm:$0xff]
        %v879 = vlaneseq
        %v880 = vshrl.u32 %v879, 7
        %v881 = vsub.s32 3, %v880
        %v882 = vrot.slane %v318, %v881
        %v883 = vmul.f32 %v877, %v882
        %v884 = vmul.f32 %v878, %v882
        %v885 = vadd.f32 %v875, %v883
        %v886 = vadd.f32 %v876, %v884
        %v887 = vld [vmem:[%s437 + $0x3] sm:$0xff]
        %v888 = vld [vmem:[%s437 + $0xb] sm:$0xff]
        %v889 = vlaneseq
        %v890 = vshrl.u32 %v889, 7
        %v891 = vsub.s32 2, %v890
        %v892 = vrot.slane %v319, %v891
        %v893 = vmul.f32 %v887, %v892
        %v894 = vmul.f32 %v888, %v892
        %v895 = vadd.f32 %v885, %v893
        %v896 = vadd.f32 %v886, %v894
        %v897 = vld [vmem:[%s437 + $0x4] sm:$0xff]
        %v898 = vld [vmem:[%s437 + $0xc] sm:$0xff]
        %v899 = vlaneseq
        %v900 = vshrl.u32 %v899, 7
        %v901 = vsub.s32 1, %v900
        %v902 = vrot.slane %v320, %v901
        %v903 = vmul.f32 %v897, %v902
        %v904 = vmul.f32 %v898, %v902
        %v905 = vadd.f32 %v895, %v903
        %v906 = vadd.f32 %v896, %v904
        %v907 = vld [vmem:[%s437 + $0x5] sm:$0xff]
        %v908 = vld [vmem:[%s437 + $0xd] sm:$0xff]
        %v909 = vlaneseq
        %v910 = vshrl.u32 %v909, 7
        %v911 = vsub.s32 0, %v910
        %v912 = vrot.slane %v321, %v911
        %v913 = vmul.f32 %v907, %v912
        %v914 = vmul.f32 %v908, %v912
        %v915 = vadd.f32 %v905, %v913
        %v916 = vadd.f32 %v906, %v914
        %v917 = vld [vmem:[%s437 + $0x6] sm:$0xff]
        %v918 = vld [vmem:[%s437 + $0xe] sm:$0xff]
        %v919 = vlaneseq
        %v920 = vshrl.u32 %v919, 7
        %v921 = vsub.s32 7, %v920
        %v922 = vrot.slane %v321, %v921
        %v923 = vmul.f32 %v917, %v922
        %v924 = vmul.f32 %v918, %v922
        %v925 = vadd.f32 %v915, %v923
        %v926 = vadd.f32 %v916, %v924
        %v927 = vld [vmem:[#allocation2] sm:$0xff]
        %v928 = vld [vmem:[#allocation2 + $0x8] sm:$0xff]
        %v929 = vld [vmem:[#allocation2 + $0x10] sm:$0xff]
        %v930 = vld [vmem:[#allocation2 + $0x18] sm:$0xff]
        %v931 = vld [vmem:[#allocation2 + $0x20] sm:$0x3f]
        %v932 = vld [vmem:[#allocation2 + $0x28] sm:$0x3f]
        %939 = vrot.lane.b32.xlu0 %v927, 80
        %v940 = vpop.permute.xlu0 %939
        %941 = vrot.lane.b32.xlu0 %v928, 80
        %v942 = vpop.permute.xlu0 %941
        %943 = vrot.lane.b32.xlu0 %v929, 80
        %v944 = vpop.permute.xlu0 %943
        %945 = vrot.lane.b32.xlu0 %v930, 80
        %v946 = vpop.permute.xlu0 %945
        %947 = vrot.lane.b32.xlu0 %v931, 80
        %v948 = vpop.permute.xlu0 %947
        %949 = vrot.lane.b32.xlu0 %v932, 80
        %v950 = vpop.permute.xlu0 %949
        %vm951 = vcmask 654336
        %v952 = vsel %vm951, %v940, %v942
        %v953 = vsel %vm951, %v944, %v946
        %v954 = vsel %vm951, %v948, %v950
        %958 = vst [vmem:[#allocation3] sm:$0xff] %v952
        %959 = vst [vmem:[#allocation3 + $0x8] sm:$0xff] %v953
        %960 = vst [vmem:[#allocation3 + $0x10] sm:$0x3f] %v954
        %v961 = vld [vmem:[#allocation3] sm:$0xff]
        %v962 = vld [vmem:[#allocation3 + $0x8] sm:$0xff]
        %v963 = vlaneseq
        %v964 = vshrl.u32 %v963, 7
        %v965 = vsub.s32 6, %v964
        %v966 = vrot.slane %v316, %v965
        %v967 = vmul.f32 %v961, %v966
        %v968 = vmul.f32 %v962, %v966
        %v969 = vadd.f32 %v925, %v967
        %v970 = vadd.f32 %v926, %v968
        %v971 = vld [vmem:[#allocation3 + $0x1] sm:$0xff]
        %v972 = vld [vmem:[#allocation3 + $0x9] sm:$0xff]
        %v973 = vlaneseq
        %v974 = vshrl.u32 %v973, 7
        %v975 = vsub.s32 5, %v974
        %v976 = vrot.slane %v317, %v975
        %v977 = vmul.f32 %v971, %v976
        %v978 = vmul.f32 %v972, %v976
        %v979 = vadd.f32 %v969, %v977
        %v980 = vadd.f32 %v970, %v978
        %v981 = vld [vmem:[#allocation3 + $0x2] sm:$0xff]
        %v982 = vld [vmem:[#allocation3 + $0xa] sm:$0xff]
        %v983 = vlaneseq
        %v984 = vshrl.u32 %v983, 7
        %v985 = vsub.s32 4, %v984
        %v986 = vrot.slane %v318, %v985
        %v987 = vmul.f32 %v981, %v986
        %v988 = vmul.f32 %v982, %v986
        %v989 = vadd.f32 %v979, %v987
        %v990 = vadd.f32 %v980, %v988
        %v991 = vld [vmem:[#allocation3 + $0x3] sm:$0xff]
        %v992 = vld [vmem:[#allocation3 + $0xb] sm:$0xff]
        %v993 = vlaneseq
        %v994 = vshrl.u32 %v993, 7
        %v995 = vsub.s32 3, %v994
        %v996 = vrot.slane %v319, %v995
        %v997 = vmul.f32 %v991, %v996
        %v998 = vmul.f32 %v992, %v996
        %v999 = vadd.f32 %v989, %v997
        %v1000 = vadd.f32 %v990, %v998
        %v1001 = vld [vmem:[#allocation3 + $0x4] sm:$0xff]
        %v1002 = vld [vmem:[#allocation3 + $0xc] sm:$0xff]
        %v1003 = vlaneseq
        %v1004 = vshrl.u32 %v1003, 7
        %v1005 = vsub.s32 2, %v1004
        %v1006 = vrot.slane %v320, %v1005
        %v1007 = vmul.f32 %v1001, %v1006
        %v1008 = vmul.f32 %v1002, %v1006
        %v1009 = vadd.f32 %v999, %v1007
        %v1010 = vadd.f32 %v1000, %v1008
        %v1011 = vld [vmem:[#allocation3 + $0x5] sm:$0xff]
        %v1012 = vld [vmem:[#allocation3 + $0xd] sm:$0xff]
        %v1013 = vlaneseq
        %v1014 = vshrl.u32 %v1013, 7
        %v1015 = vsub.s32 1, %v1014
        %v1016 = vrot.slane %v321, %v1015
        %v1017 = vmul.f32 %v1011, %v1016
        %v1018 = vmul.f32 %v1012, %v1016
        %v1019 = vadd.f32 %v1009, %v1017
        %v1020 = vadd.f32 %v1010, %v1018
        %v1021 = vld [vmem:[#allocation3 + $0x6] sm:$0xff]
        %v1022 = vld [vmem:[#allocation3 + $0xe] sm:$0xff]
        %v1023 = vlaneseq
        %v1024 = vshrl.u32 %v1023, 7
        %v1025 = vsub.s32 0, %v1024
        %v1026 = vrot.slane %v322, %v1025
        %v1027 = vmul.f32 %v1021, %v1026
        %v1028 = vmul.f32 %v1022, %v1026
        %v1029 = vadd.f32 %v1019, %v1027
        %v1030 = vadd.f32 %v1020, %v1028
        %v1031 = vmax.f32 %v1029, 0.0
        %v1032 = vmax.f32 %v1030, 0.0
        %v1033 = vld [vmem:[#allocation9] sm:$0xff]
        %v1034 = vld [vmem:[#allocation9 + $0x8] sm:$0xff]
        %v1035 = vld [vmem:[#allocation9 + $0x10] sm:$0xff]
        %v1036 = vld [vmem:[#allocation9 + $0x18] sm:$0xff]
        %v1037 = vld [vmem:[#allocation9 + $0x20] sm:$0xff]
        %v1038 = vld [vmem:[#allocation9 + $0x28] sm:$0xff]
        %v1039 = vld [vmem:[#allocation9 + $0x30] sm:$0xff]
        %v1040 = vld [vmem:[#allocation9 + $0x38] sm:$0xff]
        %v1041 = vld [vmem:[#allocation9 + $0x40] sm:$0xff]
        %v1042 = vld [vmem:[#allocation9 + $0x48] sm:$0xff]
        %v1043 = vld [vmem:[#allocation9 + $0x50] sm:$0xff]
        %v1044 = vld [vmem:[#allocation9 + $0x58] sm:$0xff]
        %v1045 = vld [vmem:[#allocation9 + $0x60] sm:$0xff]
        %v1046 = vld [vmem:[#allocation9 + $0x68] sm:$0xff]
        %v1047 = vld [vmem:[#allocation9 + $0x70] sm:$0xff]
        %v1048 = vld [vmem:[#allocation9 + $0x78] sm:$0xff]
        %v1049 = vld [vmem:[%s4] sm:$0x1]
        %v1051 = vlaneseq
        %v1052 = vshrl.u32 %v1051, 7
        %v1053 = vsub.s32 0, %v1052
        %v1054 = vrot.slane %v1049, %v1053
        %1056 = vmatprep.subr.mxu0 0.0
        %1057 = vmatpush1.msra.mxu0 %v1033
        %1058 = vmatprep.subr.mxu0 0.0
        %1059 = vmatpush1.msra.mxu0 %v1034
        %1060 = vmatprep.subr.mxu0 0.0
        %1061 = vmatpush1.msra.mxu0 %v1035
        %1062 = vmatprep.subr.mxu0 0.0
        %1063 = vmatpush1.msra.mxu0 %v1036
        %1064 = vmatprep.subr.mxu0 0.0
        %1065 = vmatpush1.msra.mxu0 %v1037
        %1066 = vmatprep.subr.mxu0 0.0
        %1067 = vmatpush1.msra.mxu0 %v1038
        %1068 = vmatprep.subr.mxu0 0.0
        %1069 = vmatpush1.msra.mxu0 %v1039
        %1070 = vmatprep.subr.mxu0 0.0
        %1071 = vmatpush1.msra.mxu0 %v1040
        %1072 = vmatprep.subr.mxu0 0.0
        %1073 = vmatpush1.msra.mxu0 %v1041
        %1074 = vmatprep.subr.mxu0 0.0
        %1075 = vmatpush1.msra.mxu0 %v1042
        %1076 = vmatprep.subr.mxu0 0.0
        %1077 = vmatpush1.msra.mxu0 %v1043
        %1078 = vmatprep.subr.mxu0 0.0
        %1079 = vmatpush1.msra.mxu0 %v1044
        %1080 = vmatprep.subr.mxu0 0.0
        %1081 = vmatpush1.msra.mxu0 %v1045
        %1082 = vmatprep.subr.mxu0 0.0
        %1083 = vmatpush1.msra.mxu0 %v1046
        %1084 = vmatprep.subr.mxu0 0.0
        %1085 = vmatpush1.msra.mxu0 %v1047
        %1086 = vmatprep.subr.mxu0 0.0
        %1087 = vmatpush1.msra.mxu0 %v1048
        %1088 = vmatprep.subr.mxu0 0.0
        %1089 = vmatpush1.msra.mxu0 0.0
        %1090 = vmatprep.subr.mxu0 0.0
        %1091 = vmatpush1.msra.mxu0 0.0
        %1092 = vmatprep.subr.mxu0 0.0
        %1093 = vmatpush1.msra.mxu0 0.0
        %1094 = vmatprep.subr.mxu0 0.0
        %1095 = vmatpush1.msra.mxu0 0.0
        %1096 = vmatprep.subr.mxu0 0.0
        %1097 = vmatpush1.msra.mxu0 0.0
        %1098 = vmatprep.subr.mxu0 0.0
        %1099 = vmatpush1.msra.mxu0 0.0
        %1100 = vmatprep.subr.mxu0 0.0
        %1101 = vmatpush1.msra.mxu0 0.0
        %1102 = vmatprep.subr.mxu0 0.0
        %1103 = vmatpush1.msra.mxu0 0.0
        %1104 = vmatprep.subr.mxu0 0.0
        %1105 = vmatpush1.msra.mxu0 0.0
        %1106 = vmatprep.subr.mxu0 0.0
        %1107 = vmatpush1.msra.mxu0 0.0
        %1108 = vmatprep.subr.mxu0 0.0
        %1109 = vmatpush1.msra.mxu0 0.0
        %1110 = vmatprep.subr.mxu0 0.0
        %1111 = vmatpush1.msra.mxu0 0.0
        %1112 = vmatprep.subr.mxu0 0.0
        %1113 = vmatpush1.msra.mxu0 0.0
        %1114 = vmatprep.subr.mxu0 0.0
        %1115 = vmatpush1.msra.mxu0 0.0
        %1116 = vmatprep.subr.mxu0 0.0
        %1117 = vmatpush1.msra.mxu0 0.0
        %1118 = vmatprep.subr.mxu0 0.0
        %1119 = vmatpush1.msra.mxu0 0.0
        %1120 = vmatprep.mubr.f32.mxu0 0.0
        %1121 = vmatmul.mubr.f32.gmra.mrb[0].mxu0 %v1031
        %v1122 = vpop.f32.mrb[0].mxu0
        %v1123 = vadd.f32 %v1054, %v1122
        %v1124 = vpop.f32.mrb[0].mxu0
        %1125 = vmatprep.mubr.f32.mxu0 0.0
        %1126 = vmatmul.mubr.f32.gmra.mrb[0].mxu0 %v1032
        %v1127 = vpop.f32.mrb[0].mxu0
        %v1128 = vadd.f32 %v1054, %v1127
        %v1129 = vpop.f32.mrb[0].mxu0
        %1130 = vdwg.mxu0
        %v1131 = vxor.u32 %v1123, 2147483648
        %v1132 = vxor.u32 %v1128, 2147483648
        %v1133 = vmul.f32 %v1131, 1.442695
        %v1134 = vpow.pop %v1133
        %v1135 = vmul.f32 %v1132, 1.442695
        %v1136 = vpow.pop %v1135
        %v1137 = vadd.f32 %v1134, 1.0
        %v1138 = vadd.f32 %v1136, 1.0
        %v1139 = vrcp.pop %v1137
        %v1140 = vmul.f32 1.0, %v1139
        %v1141 = vrcp.pop %v1138
        %v1142 = vmul.f32 1.0, %v1141
        %v1143 = vld [vmem:[%s237] sm:$0xff]
        %v1144 = vld [vmem:[%s237 + $0x8] sm:$0xff]
        %v1145 = vmul.f32 %v1143, %v1140
        %v1146 = vmul.f32 %v1144, %v1142
        %1147 = vst [vmem:[%s271] sm:$0xff] %v1145
        %1148 = vst [vmem:[%s271 + $0x8] sm:$0xff] %v1146
        %s1149 = sand.u32 %s141, 1
        %s1150 = scalar_lea.sflag [#allocation6], %s1149
        %s1151 = sand.u32 %s141, 1
        %s1152 = smul.addr %s1151, 16
        %s1153 = scalar_lea.vmem [#allocation10], %s1152
        // Predicated region
        $region53: #{tpu_custom_call.1} parent=39 // pred_check
          %p1154 = pneg %p151
        $region54: #{tpu_custom_call.1} parent=39 // pred_check_branch
          %1156 = sbr.rel (%p1154) target = $region56
        $region55: #{tpu_custom_call.1} parent=39 // pred_region
          %s1158 = ssub.s32 256, 256
          %1159 = vsyncadd %s1150, %s1158
          %s1160 = smul.addr %s23, 2
          %s1161 = smul.addr %s1160, 128
          %s1162 = scalar_lea.hbm %s5, %s1161
          %s1163 = sshll.u32 %s1153, 4
          %s1164 = int_to_ptr.vmem [resolvable:$true] %s1163
          %1169 = dma.vmem_to_hbm [thread:$0]  %s1164, 256, %s1162, %s1150, 128, 128, 8
        $region56: #{tpu_custom_call.1} parent=39 // pred_fallthru
          _
      $region40: #{tpu_custom_call.1} parent=5 // pred_fallthru
        _
      %p1170 = scmp.le.s32.totalorder 2, %s18
      // Predicated region
      $region57: #{tpu_custom_call.1} parent=5 // pred_check
        %p1171 = pneg %p1170
      $region58: #{tpu_custom_call.1} parent=5 // pred_check_branch
        %1173 = sbr.rel (%p1171) target = $region60
      $region59: #{tpu_custom_call.1} parent=5 // pred_region
        %s1174 = ssub.s32 %s18, 2
        // Predicated region
        $region61: #{tpu_custom_call.1} parent=59 // pred_check
          %p1175 = pneg %p157
        $region62: #{tpu_custom_call.1} parent=59 // pred_check_branch
          %1177 = sbr.rel (%p1175) target = $region64
        $region63: #{tpu_custom_call.1} parent=59 // pred_region
          %s1178 = sand.u32 %s142, 1
          %s1179 = scalar_lea.sflag [#allocation6], %s1178
          %s1180 = sand.u32 %s142, 1
          %s1181 = smul.addr %s1180, 16
          %s1182 = scalar_lea.vmem [#allocation10], %s1181
          %1183 = dma.done %s1179, 256
        $region64: #{tpu_custom_call.1} parent=59 // pred_fallthru
          _
      $region60: #{tpu_custom_call.1} parent=5 // pred_fallthru
        _
    $region6: #{tpu_custom_call.1} parent=1 // loop_footer
      %s22 = sadd.s32 1, %s18
    $region7: #{tpu_custom_call.1} parent=1 // loop_footer_branch
      %17 = sbr.rel target = $region3
    $region8: #{tpu_custom_call.1} parent=1 // loop_exit
      _
    %1184 = vsyncpa [#allocation5], 1
    %s1185 = scalar_lea.sflag [#allocation5], 1
    %1186 = vsyncpa %s1185, 1
    %1187 = vsyncpa [#allocation8], 1
    %1188 = vsyncpa [#allocation6], 1
    %s1189 = scalar_lea.sflag [#allocation6], 1
    %1190 = vsyncpa %s1189, 1

</llo_original>
